<compile_context>
chip_gen: v7x
topology: tpu7x:2x2x1
jax: 0.10.0
libtpu: 0.0.40
codegen_flags: <defaults>
</compile_context>

<pallas_src>
import functools

import jax
import jax.numpy as jnp
import numpy as np
from jax.experimental import pallas as pl
from jax.experimental.pallas import tpu as pltpu


def _round_up(x, m):
    return (x + m - 1) // m * m


def _gru_kernel(x_ref, w_ihT_ref, w_hhT_ref, b_gi_ref, b_hn_ref,
                w_outT_ref, b_out_ref,
                y_ref, hn_ref,
                gi_ref, h_all_ref,
                *, seq_len, needs_mask):
    """One (batch_tile, time_chunk) grid point.

    x_ref      : (Tc*Bt, I)    time-major chunk rows (row = t*Bt + b_local)
    w_ihT_ref  : (I, 3Hp)      pre-transposed input->hidden weights (r|z|n)
    w_hhT_ref  : (Hp, 3Hp)     pre-transposed hidden->hidden weights (f32)
    b_gi_ref   : (1, 3Hp)      [b_ir+b_hr | b_iz+b_hz | b_in]  (pre-folded)
    b_hn_ref   : (1, Hp)       b_hn (stays inside r * (...))
    w_outT_ref : (Hp, Op)      pre-transposed output Linear weight
    b_out_ref  : (1, Op)
    y_ref      : (Tc*Bt, Op)   per-step Linear outputs for this chunk
    hn_ref     : (Bt, Hp)      hidden carry; resident across the chunk axis
    gi_ref     : (Tc*Bt, 3Hp)  scratch: hoisted input projection
    h_all_ref  : (Tc*Bt, Hp)   scratch: stacked hidden states of this chunk
    """
    chunk = pl.program_id(1)
    Hp = w_hhT_ref.shape[0]
    Bt = hn_ref.shape[0]
    Tc = x_ref.shape[0] // Bt

    # The h carry lives in hn_ref: its BlockSpec maps to the same block for
    # every chunk, so it stays VMEM-resident along the "arbitrary" time axis.
    @pl.when(chunk == 0)
    def _():
        hn_ref[...] = jnp.zeros_like(hn_ref)

    # --- 1) Hoisted input projection for the whole chunk: one MXU matmul.
    #     (If the weights are bf16, the cast makes this a bf16 MXU matmul;
    #      accumulation stays f32 via preferred_element_type.)
    gi_ref[...] = (
        jnp.dot(x_ref[...].astype(w_ihT_ref.dtype), w_ihT_ref[...],
                preferred_element_type=jnp.float32)
        + b_gi_ref[...]
    )

    # Hoist the b_hn sublane broadcast out of the (unrolled) serial loop.
    b_hn_b = jnp.broadcast_to(b_hn_ref[...], (Bt, Hp))

    # --- 2) Serial recurrence over this chunk's timesteps.
    def step(t, h):
        row = pl.multiple_of(t * Bt, 8)
        gi = gi_ref[pl.ds(row, Bt), :]                                # (Bt, 3Hp)
        # Stream W_hh^T from VMEM into the MXU each step (do NOT bind it as a
        # hoisted value: (Hp,3Hp) f32 would pin 48+ vregs and force spills).
        gh = jnp.dot(h, w_hhT_ref[...],
                     preferred_element_type=jnp.float32)              # (Bt, 3Hp)
        # Fused r/z sigmoid over the contiguous first 2*Hp lanes.
        rz = jax.nn.sigmoid(gi[:, :2 * Hp] + gh[:, :2 * Hp])
        r = rz[:, :Hp]
        z = rz[:, Hp:]
        n = jnp.tanh(gi[:, 2 * Hp:] + r * (gh[:, 2 * Hp:] + b_hn_b))
        h_new = n + z * (h - n)               # == (1-z)*n + z*h, one fewer vmul
        h_all_ref[pl.ds(row, Bt), :] = h_new
        if needs_mask:
            # Zero-padded tail timesteps must not advance the hidden carry.
            h_new = jnp.where(chunk * Tc + t < seq_len, h_new, h)
        return h_new

    unroll = Tc if Tc <= 8 else 8             # bounded unroll (vreg pressure)
    h_final = jax.lax.fori_loop(0, Tc, step, hn_ref[...], unroll=unroll)
    hn_ref[...] = h_final

    # --- 3) Hoisted output Linear over this chunk's stacked hidden states.
    y_ref[...] = (
        jnp.dot(h_all_ref[...].astype(w_outT_ref.dtype), w_outT_ref[...],
                preferred_element_type=jnp.float32)
        + b_out_ref[...]
    )


def gru_forward(x, params, *, time_chunk=32, batch_tile=None,
                bf16_matmuls=False):
    """x: (B, S, I) float32, batch_first like the PyTorch module.

    Returns (outputs [B, S, O], hidden [1, B, H])."""
    w_ih, w_hh, b_ih, b_hh, w_out, b_out = params
    B, S, I = x.shape
    H = w_hh.shape[1]
    O = w_out.shape[0]

    LANE, SUB = 128, 8
    Hp = _round_up(H, LANE)
    Op = _round_up(O, LANE)

    # Batch tiling (the "parallel" grid axis; >1 tile uses both TCs on v7x).
    Bmin = _round_up(B, SUB)
    Bt = Bmin if batch_tile is None else _round_up(min(batch_tile, Bmin), SUB)
    Bp = _round_up(B, Bt)
    nbt = Bp // Bt

    # Time chunking (the serial "arbitrary" grid axis carrying h).
    Tc = max(1, min(time_chunk, S))
    n_chunks = -(-S // Tc)
    S_pad = n_chunks * Tc

    # --- host-side layout prep (done once, outside the kernel) -------------
    def pad_gate_rows(w):
        # (3H, C) -> (3Hp, C): pad each of the r|z|n blocks independently so
        # gate slabs land at lane-aligned offsets 0, Hp, 2Hp.
        blocks = [jnp.pad(w[g * H:(g + 1) * H], ((0, Hp - H), (0, 0)))
                  for g in range(3)]
        return jnp.concatenate(blocks, axis=0)

    w_ihT = pad_gate_rows(w_ih).T                                     # (I, 3Hp)
    w_hhT = jnp.pad(pad_gate_rows(w_hh), ((0, 0), (0, Hp - H))).T     # (Hp, 3Hp)

    b_gi = jnp.concatenate([
        jnp.pad(b_ih[0 * H:1 * H] + b_hh[0 * H:1 * H], (0, Hp - H)),
        jnp.pad(b_ih[1 * H:2 * H] + b_hh[1 * H:2 * H], (0, Hp - H)),
        jnp.pad(b_ih[2 * H:3 * H], (0, Hp - H)),
    ]).reshape(1, 3 * Hp)
    b_hn = jnp.pad(b_hh[2 * H:3 * H], (0, Hp - H)).reshape(1, Hp)

    w_outT = jnp.pad(w_out, ((0, Op - O), (0, Hp - H))).T             # (Hp, Op)
    b_out_p = jnp.pad(b_out, (0, Op - O)).reshape(1, Op)

    if bf16_matmuls:
        # bf16 MXU inputs for the two hoisted matmuls only; W_hh / gate math
        # stay f32 (v5e VPU/EUP have no bf16).
        w_ihT = w_ihT.astype(jnp.bfloat16)
        w_outT = w_outT.astype(jnp.bfloat16)

    # x -> (nbt, S_pad*Bt, I), time-major within each batch tile.
    x_tm = jnp.transpose(x, (1, 0, 2))                                # (S, B, I)
    x_tm = jnp.pad(x_tm, ((0, S_pad - S), (0, Bp - B), (0, 0)))
    x_r = (x_tm.reshape(S_pad, nbt, Bt, I)
               .transpose(1, 0, 2, 3)
               .reshape(nbt, S_pad * Bt, I))

    # Explicit VMEM budget (double-buffered blocks + weights + scratches).
    wsz = 2 if bf16_matmuls else 4
    est = (2 * Tc * Bt * I * 4 + 2 * Tc * Bt * Op * 4 + 2 * Bt * Hp * 4
           + 2 * (I * 3 * Hp * wsz + Hp * 3 * Hp * 4 + Hp * Op * wsz)
           + 2 * (3 * Hp + Hp + Op) * 4
           + Tc * Bt * 3 * Hp * 4 + Tc * Bt * Hp * 4)
    vmem_limit = int(min(64 * 2**20, max(8 * 2**20, 2 * est)))

    kernel = functools.partial(_gru_kernel, seq_len=S,
                               needs_mask=(S_pad != S))

    y_r, hn_r = pl.pallas_call(
        kernel,
        out_shape=(
            jax.ShapeDtypeStruct((nbt, S_pad * Bt, Op), jnp.float32),
            jax.ShapeDtypeStruct((nbt, Bt, Hp), jnp.float32),
        ),
        grid_spec=pltpu.PrefetchScalarGridSpec(
            num_scalar_prefetch=0,
            grid=(nbt, n_chunks),
            in_specs=[
                pl.BlockSpec((None, Tc * Bt, I), lambda b, c: (b, c, 0)),   # x
                pl.BlockSpec((I, 3 * Hp), lambda b, c: (0, 0)),       # w_ih^T
                pl.BlockSpec((Hp, 3 * Hp), lambda b, c: (0, 0)),      # w_hh^T
                pl.BlockSpec((1, 3 * Hp), lambda b, c: (0, 0)),       # folded bias
                pl.BlockSpec((1, Hp), lambda b, c: (0, 0)),           # b_hn
                pl.BlockSpec((Hp, Op), lambda b, c: (0, 0)),          # w_out^T
                pl.BlockSpec((1, Op), lambda b, c: (0, 0)),           # b_out
            ],
            out_specs=[
                pl.BlockSpec((None, Tc * Bt, Op), lambda b, c: (b, c, 0)),  # y
                pl.BlockSpec((None, Bt, Hp), lambda b, c: (b, 0, 0)),       # h carry
            ],
            scratch_shapes=[
                pltpu.VMEM((Tc * Bt, 3 * Hp), jnp.float32),           # hoisted gi
                pltpu.VMEM((Tc * Bt, Hp), jnp.float32),               # stacked h
            ],
        ),
        compiler_params=pltpu.CompilerParams(
            dimension_semantics=("parallel", "arbitrary"),
            vmem_limit_bytes=vmem_limit,
        ),
    )(x_r, w_ihT, w_hhT, b_gi, b_hn, w_outT, b_out_p)

    # un-pad / back to batch_first
    y = (y_r.reshape(nbt, S_pad, Bt, Op)
             .transpose(1, 0, 2, 3)
             .reshape(S_pad, Bp, Op)[:S, :B, :O]
             .transpose(1, 0, 2))                                      # (B, S, O)
    h_n = hn_r.reshape(Bp, Hp)[:B, :H][None]                           # (1, B, H)
    return y, h_n


def _init_params(key, input_size, hidden_size, output_size):
    """Deterministic init mimicking PyTorch's U(-1/sqrt(H), 1/sqrt(H))."""
    ks = jax.random.split(key, 6)
    k = 1.0 / np.sqrt(hidden_size)
    w_ih = jax.random.uniform(ks[0], (3 * hidden_size, input_size), jnp.float32, -k, k)
    w_hh = jax.random.uniform(ks[1], (3 * hidden_size, hidden_size), jnp.float32, -k, k)
    b_ih = jax.random.uniform(ks[2], (3 * hidden_size,), jnp.float32, -k, k)
    b_hh = jax.random.uniform(ks[3], (3 * hidden_size,), jnp.float32, -k, k)
    w_out = jax.random.uniform(ks[4], (output_size, hidden_size), jnp.float32, -k, k)
    b_out = jax.random.uniform(ks[5], (output_size,), jnp.float32, -k, k)
    return (w_ih, w_hh, b_ih, b_hh, w_out, b_out)


def _reference_forward(x, params):
    """Pure-JAX reference replicating the PyTorch forward loop."""
    w_ih, w_hh, b_ih, b_hh, w_out, b_out = params
    B, S, _ = x.shape
    H = w_hh.shape[1]
    h = jnp.zeros((B, H), jnp.float32)
    outs = []
    for t in range(S):
        xt = x[:, t, :]
        gi = xt @ w_ih.T + b_ih
        gh = h @ w_hh.T + b_hh
        r = jax.nn.sigmoid(gi[:, :H] + gh[:, :H])
        z = jax.nn.sigmoid(gi[:, H:2 * H] + gh[:, H:2 * H])
        n = jnp.tanh(gi[:, 2 * H:] + r * gh[:, 2 * H:])
        h = (1.0 - z) * n + z * h
        outs.append(h @ w_out.T + b_out)
    return jnp.stack(outs, axis=1), h[None]


if __name__ == "__main__":
    # Small shapes implied by the module; chosen so the chunked/tiled paths
    # are exercised (2 batch tiles, 3 time chunks, padded tail timesteps).
    batch, seq, input_size, hidden_size, output_size = 12, 10, 16, 32, 8

    key = jax.random.PRNGKey(0)
    k_x, k_p = jax.random.split(key)
    x = jax.random.normal(k_x, (batch, seq, input_size), jnp.float32)
    params = _init_params(k_p, input_size, hidden_size, output_size)

    y, h_n = jax.block_until_ready(
        gru_forward(x, params, time_chunk=4, batch_tile=8))

    y_ref, h_ref = _reference_forward(x, params)
    assert y.shape == (batch, seq, output_size)
    assert h_n.shape == (1, batch, hidden_size)
    np.testing.assert_allclose(np.asarray(y), np.asarray(y_ref), rtol=1e-4, atol=1e-4)
    np.testing.assert_allclose(np.asarray(h_n), np.asarray(h_ref), rtol=1e-4, atol=1e-4)

    # bf16 MXU-input path for the hoisted projections (per perf review);
    # gate math stays f32, so only a loose tolerance change vs the f32 ref.
    y_bf, h_bf = jax.block_until_ready(
        gru_forward(x, params, time_chunk=4, batch_tile=8, bf16_matmuls=True))
    np.testing.assert_allclose(np.asarray(y_bf), np.asarray(y_ref), rtol=5e-2, atol=5e-2)
    np.testing.assert_allclose(np.asarray(h_bf), np.asarray(h_ref), rtol=5e-2, atol=5e-2)

    print("KERNEL_OK")
</pallas_src>

<mosaic_0001>
module attributes {stable_mosaic.version = 11 : i64} {
  func.func @_gru_kernel(%arg0: i32, %arg1: i32, %arg2: memref<1x32x16xf32, #tpu.memory_space<vmem>>, %arg3: memref<16x384xf32, #tpu.memory_space<vmem>>, %arg4: memref<128x384xf32, #tpu.memory_space<vmem>>, %arg5: memref<1x384xf32, #tpu.memory_space<vmem>>, %arg6: memref<1x128xf32, #tpu.memory_space<vmem>>, %arg7: memref<128x128xf32, #tpu.memory_space<vmem>>, %arg8: memref<1x128xf32, #tpu.memory_space<vmem>>, %arg9: memref<1x32x128xf32, #tpu.memory_space<vmem>>, %arg10: memref<1x8x128xf32, #tpu.memory_space<vmem>>, %arg11: memref<32x384xf32, #tpu.memory_space<vmem>>, %arg12: memref<32x128xf32, #tpu.memory_space<vmem>>) attributes {dimension_semantics = [#tpu.dimension_semantics<parallel>, #tpu.dimension_semantics<arbitrary>], iteration_bounds = array<i64: 2, 3>, scalar_prefetch = 0 : i64, scratch_operands = 2 : i64, tpu.core_type = #tpu.core_type<tc>, window_params = [{transform_indices = @transform_0, window_bounds = array<i64: 1, 32, 16>}, {pipeline_mode = #tpu.pipeline_mode<synchronous>, transform_indices = @transform_1, window_bounds = array<i64: 16, 384>}, {pipeline_mode = #tpu.pipeline_mode<synchronous>, transform_indices = @transform_2, window_bounds = array<i64: 128, 384>}, {pipeline_mode = #tpu.pipeline_mode<synchronous>, transform_indices = @transform_3, window_bounds = array<i64: 1, 384>}, {pipeline_mode = #tpu.pipeline_mode<synchronous>, transform_indices = @transform_4, window_bounds = array<i64: 1, 128>}, {pipeline_mode = #tpu.pipeline_mode<synchronous>, transform_indices = @transform_5, window_bounds = array<i64: 128, 128>}, {pipeline_mode = #tpu.pipeline_mode<synchronous>, transform_indices = @transform_6, window_bounds = array<i64: 1, 128>}, {transform_indices = @transform_7, window_bounds = array<i64: 1, 32, 128>}, {transform_indices = @transform_8, window_bounds = array<i64: 1, 8, 128>}]} {
    %c0_i32 = arith.constant 0 : i32
    %0 = arith.cmpi eq, %arg1, %c0_i32 : i32
    %1 = arith.extui %0 : i1 to i32
    %c0_i32_0 = arith.constant 0 : i32
    %2 = arith.cmpi ne, %1, %c0_i32_0 : i32
    scf.if %2 {
      %cst_62 = arith.constant 0.000000e+00 : f32
      %152 = vector.broadcast %cst_62 : f32 to vector<8x128xf32>
      %c0_63 = arith.constant 0 : index
      %c0_64 = arith.constant 0 : index
      %c0_65 = arith.constant 0 : index
      %153 = vector.load %arg10[%c0_63, %c0_64, %c0_65] : memref<1x8x128xf32, #tpu.memory_space<vmem>>, vector<1x8x128xf32>
      %154 = vector.shape_cast %153 : vector<1x8x128xf32> to vector<8x128xf32>
      %155 = vector.shape_cast %152 : vector<8x128xf32> to vector<1x8x128xf32>
      tpu.vector_store %arg10[%c0_63, %c0_64, %c0_65], %155 {strides = array<i32>} : memref<1x8x128xf32, #tpu.memory_space<vmem>>, vector<1x8x128xf32>,
    } else {
    }
    %c0 = arith.constant 0 : index
    %c0_1 = arith.constant 0 : index
    %c0_2 = arith.constant 0 : index
    %3 = vector.load %arg2[%c0, %c0_1, %c0_2] : memref<1x32x16xf32, #tpu.memory_space<vmem>>, vector<1x32x16xf32>
    %4 = vector.shape_cast %3 : vector<1x32x16xf32> to vector<32x16xf32>
    %c0_3 = arith.constant 0 : index
    %c0_4 = arith.constant 0 : index
    %5 = vector.load %arg3[%c0_3, %c0_4] : memref<16x384xf32, #tpu.memory_space<vmem>>, vector<16x384xf32>
    %cst = arith.constant dense<0.000000e+00> : vector<32x384xf32>
    %6 = tpu.matmul %4, %5, %cst {dimension_numbers = #tpu.dot_dimension_numbers<[1], [0], [0], [1], [0, 0, 1, 1], [], []>} : vector<32x16xf32>, vector<16x384xf32>, vector<32x384xf32> -> vector<32x384xf32>
    %c0_5 = arith.constant 0 : index
    %c0_6 = arith.constant 0 : index
    %7 = vector.load %arg5[%c0_5, %c0_6] : memref<1x384xf32, #tpu.memory_space<vmem>>, vector<1x384xf32>
    %8 = vector.broadcast %7 : vector<1x384xf32> to vector<32x384xf32>
    %9 = arith.addf %6, %8 : vector<32x384xf32>
    %c0_7 = arith.constant 0 : index
    %c0_8 = arith.constant 0 : index
    %10 = vector.load %arg11[%c0_7, %c0_8] : memref<32x384xf32, #tpu.memory_space<vmem>>, vector<32x384xf32>
    tpu.vector_store %arg11[%c0_7, %c0_8], %9 {strides = array<i32>} : memref<32x384xf32, #tpu.memory_space<vmem>>, vector<32x384xf32>,
    %c0_9 = arith.constant 0 : index
    %c0_10 = arith.constant 0 : index
    %11 = vector.load %arg6[%c0_9, %c0_10] : memref<1x128xf32, #tpu.memory_space<vmem>>, vector<1x128xf32>
    %12 = vector.shape_cast %11 : vector<1x128xf32> to vector<1x128xf32>
    %13 = vector.broadcast %12 : vector<1x128xf32> to vector<8x128xf32>
    %c0_11 = arith.constant 0 : index
    %c0_12 = arith.constant 0 : index
    %c0_13 = arith.constant 0 : index
    %14 = vector.load %arg10[%c0_11, %c0_12, %c0_13] : memref<1x8x128xf32, #tpu.memory_space<vmem>>, vector<1x8x128xf32>
    %15 = vector.shape_cast %14 : vector<1x8x128xf32> to vector<8x128xf32>
    %c0_i32_14 = arith.constant 0 : i32
    %c8_i32 = arith.constant 8 : i32
    %16 = arith.muli %c0_i32_14, %c8_i32 : i32
    %17 = tpu.assume_multiple %16, 8 : i32
    %18 = arith.index_cast %17 : i32 to index
    %c0_15 = arith.constant 0 : index
    %19 = vector.load %arg11[%18, %c0_15] : memref<32x384xf32, #tpu.memory_space<vmem>>, vector<8x384xf32>
    %c0_16 = arith.constant 0 : index
    %c0_17 = arith.constant 0 : index
    %20 = vector.load %arg4[%c0_16, %c0_17] : memref<128x384xf32, #tpu.memory_space<vmem>>, vector<128x384xf32>
    %cst_18 = arith.constant dense<0.000000e+00> : vector<8x384xf32>
    %21 = tpu.matmul %15, %20, %cst_18 {dimension_numbers = #tpu.dot_dimension_numbers<[1], [0], [0], [1], [0, 0, 1, 1], [], []>} : vector<8x128xf32>, vector<128x384xf32>, vector<8x384xf32> -> vector<8x384xf32>
    %22 = vector.extract_strided_slice %19 {offsets = [0, 0], sizes = [8, 256], strides = [1, 1]} : vector<8x384xf32> to vector<8x256xf32>
    %23 = vector.extract_strided_slice %21 {offsets = [0, 0], sizes = [8, 256], strides = [1, 1]} : vector<8x384xf32> to vector<8x256xf32>
    %24 = arith.addf %22, %23 : vector<8x256xf32>
    %25 = arith.negf %24 : vector<8x256xf32>
    %26 = math.exp %25 : vector<8x256xf32>
    %cst_19 = arith.constant 1.000000e+00 : f32
    %27 = vector.broadcast %cst_19 : f32 to vector<8x256xf32>
    %28 = arith.addf %27, %26 : vector<8x256xf32>
    %29 = arith.divf %27, %28 : vector<8x256xf32>
    %30 = vector.extract_strided_slice %29 {offsets = [0, 0], sizes = [8, 128], strides = [1, 1]} : vector<8x256xf32> to vector<8x128xf32>
    %31 = vector.extract_strided_slice %29 {offsets = [0, 128], sizes = [8, 128], strides = [1, 1]} : vector<8x256xf32> to vector<8x128xf32>
    %32 = vector.extract_strided_slice %19 {offsets = [0, 256], sizes = [8, 128], strides = [1, 1]} : vector<8x384xf32> to vector<8x128xf32>
    %33 = vector.extract_strided_slice %21 {offsets = [0, 256], sizes = [8, 128], strides = [1, 1]} : vector<8x384xf32> to vector<8x128xf32>
    %34 = arith.addf %33, %13 : vector<8x128xf32>
    %35 = arith.mulf %30, %34 : vector<8x128xf32>
    %36 = arith.addf %32, %35 : vector<8x128xf32>
    %37 = math.tanh %36 : vector<8x128xf32>
    %38 = arith.subf %15, %37 : vector<8x128xf32>
    %39 = arith.mulf %31, %38 : vector<8x128xf32>
    %40 = arith.addf %37, %39 : vector<8x128xf32>
    %41 = arith.index_cast %17 : i32 to index
    %c0_20 = arith.constant 0 : index
    %42 = vector.load %arg12[%41, %c0_20] : memref<32x128xf32, #tpu.memory_space<vmem>>, vector<8x128xf32>
    tpu.vector_store %arg12[%41, %c0_20], %40 {strides = array<i32>} : memref<32x128xf32, #tpu.memory_space<vmem>>, vector<8x128xf32>,
    %c4_i32 = arith.constant 4 : i32
    %43 = arith.muli %arg1, %c4_i32 : i32
    %44 = arith.addi %43, %c0_i32_14 : i32
    %c10_i32 = arith.constant 10 : i32
    %45 = arith.cmpi slt, %44, %c10_i32 : i32
    %46 = arith.select %45, %40, %15 : vector<8x128xf32>
    %c1_i32 = arith.constant 1 : i32
    %c8_i32_21 = arith.constant 8 : i32
    %47 = arith.muli %c1_i32, %c8_i32_21 : i32
    %48 = tpu.assume_multiple %47, 8 : i32
    %49 = arith.index_cast %48 : i32 to index
    %c0_22 = arith.constant 0 : index
    %50 = vector.load %arg11[%49, %c0_22] : memref<32x384xf32, #tpu.memory_space<vmem>>, vector<8x384xf32>
    %c0_23 = arith.constant 0 : index
    %c0_24 = arith.constant 0 : index
    %51 = vector.load %arg4[%c0_23, %c0_24] : memref<128x384xf32, #tpu.memory_space<vmem>>, vector<128x384xf32>
    %cst_25 = arith.constant dense<0.000000e+00> : vector<8x384xf32>
    %52 = tpu.matmul %46, %51, %cst_25 {dimension_numbers = #tpu.dot_dimension_numbers<[1], [0], [0], [1], [0, 0, 1, 1], [], []>} : vector<8x128xf32>, vector<128x384xf32>, vector<8x384xf32> -> vector<8x384xf32>
    %53 = vector.extract_strided_slice %50 {offsets = [0, 0], sizes = [8, 256], strides = [1, 1]} : vector<8x384xf32> to vector<8x256xf32>
    %54 = vector.extract_strided_slice %52 {offsets = [0, 0], sizes = [8, 256], strides = [1, 1]} : vector<8x384xf32> to vector<8x256xf32>
    %55 = arith.addf %53, %54 : vector<8x256xf32>
    %56 = arith.negf %55 : vector<8x256xf32>
    %57 = math.exp %56 : vector<8x256xf32>
    %cst_26 = arith.constant 1.000000e+00 : f32
    %58 = vector.broadcast %cst_26 : f32 to vector<8x256xf32>
    %59 = arith.addf %58, %57 : vector<8x256xf32>
    %60 = arith.divf %58, %59 : vector<8x256xf32>
    %61 = vector.extract_strided_slice %60 {offsets = [0, 0], sizes = [8, 128], strides = [1, 1]} : vector<8x256xf32> to vector<8x128xf32>
    %62 = vector.extract_strided_slice %60 {offsets = [0, 128], sizes = [8, 128], strides = [1, 1]} : vector<8x256xf32> to vector<8x128xf32>
    %63 = vector.extract_strided_slice %50 {offsets = [0, 256], sizes = [8, 128], strides = [1, 1]} : vector<8x384xf32> to vector<8x128xf32>
    %64 = vector.extract_strided_slice %52 {offsets = [0, 256], sizes = [8, 128], strides = [1, 1]} : vector<8x384xf32> to vector<8x128xf32>
    %65 = arith.addf %64, %13 : vector<8x128xf32>
    %66 = arith.mulf %61, %65 : vector<8x128xf32>
    %67 = arith.addf %63, %66 : vector<8x128xf32>
    %68 = math.tanh %67 : vector<8x128xf32>
    %69 = arith.subf %46, %68 : vector<8x128xf32>
    %70 = arith.mulf %62, %69 : vector<8x128xf32>
    %71 = arith.addf %68, %70 : vector<8x128xf32>
    %72 = arith.index_cast %48 : i32 to index
    %c0_27 = arith.constant 0 : index
    %73 = vector.load %arg12[%72, %c0_27] : memref<32x128xf32, #tpu.memory_space<vmem>>, vector<8x128xf32>
    tpu.vector_store %arg12[%72, %c0_27], %71 {strides = array<i32>} : memref<32x128xf32, #tpu.memory_space<vmem>>, vector<8x128xf32>,
    %c4_i32_28 = arith.constant 4 : i32
    %74 = arith.muli %arg1, %c4_i32_28 : i32
    %75 = arith.addi %74, %c1_i32 : i32
    %c10_i32_29 = arith.constant 10 : i32
    %76 = arith.cmpi slt, %75, %c10_i32_29 : i32
    %77 = arith.select %76, %71, %46 : vector<8x128xf32>
    %c2_i32 = arith.constant 2 : i32
    %c8_i32_30 = arith.constant 8 : i32
    %78 = arith.muli %c2_i32, %c8_i32_30 : i32
    %79 = tpu.assume_multiple %78, 8 : i32
    %80 = arith.index_cast %79 : i32 to index
    %c0_31 = arith.constant 0 : index
    %81 = vector.load %arg11[%80, %c0_31] : memref<32x384xf32, #tpu.memory_space<vmem>>, vector<8x384xf32>
    %c0_32 = arith.constant 0 : index
    %c0_33 = arith.constant 0 : index
    %82 = vector.load %arg4[%c0_32, %c0_33] : memref<128x384xf32, #tpu.memory_space<vmem>>, vector<128x384xf32>
    %cst_34 = arith.constant dense<0.000000e+00> : vector<8x384xf32>
    %83 = tpu.matmul %77, %82, %cst_34 {dimension_numbers = #tpu.dot_dimension_numbers<[1], [0], [0], [1], [0, 0, 1, 1], [], []>} : vector<8x128xf32>, vector<128x384xf32>, vector<8x384xf32> -> vector<8x384xf32>
    %84 = vector.extract_strided_slice %81 {offsets = [0, 0], sizes = [8, 256], strides = [1, 1]} : vector<8x384xf32> to vector<8x256xf32>
    %85 = vector.extract_strided_slice %83 {offsets = [0, 0], sizes = [8, 256], strides = [1, 1]} : vector<8x384xf32> to vector<8x256xf32>
    %86 = arith.addf %84, %85 : vector<8x256xf32>
    %87 = arith.negf %86 : vector<8x256xf32>
    %88 = math.exp %87 : vector<8x256xf32>
    %cst_35 = arith.constant 1.000000e+00 : f32
    %89 = vector.broadcast %cst_35 : f32 to vector<8x256xf32>
    %90 = arith.addf %89, %88 : vector<8x256xf32>
    %91 = arith.divf %89, %90 : vector<8x256xf32>
    %92 = vector.extract_strided_slice %91 {offsets = [0, 0], sizes = [8, 128], strides = [1, 1]} : vector<8x256xf32> to vector<8x128xf32>
    %93 = vector.extract_strided_slice %91 {offsets = [0, 128], sizes = [8, 128], strides = [1, 1]} : vector<8x256xf32> to vector<8x128xf32>
    %94 = vector.extract_strided_slice %81 {offsets = [0, 256], sizes = [8, 128], strides = [1, 1]} : vector<8x384xf32> to vector<8x128xf32>
    %95 = vector.extract_strided_slice %83 {offsets = [0, 256], sizes = [8, 128], strides = [1, 1]} : vector<8x384xf32> to vector<8x128xf32>
    %96 = arith.addf %95, %13 : vector<8x128xf32>
    %97 = arith.mulf %92, %96 : vector<8x128xf32>
    %98 = arith.addf %94, %97 : vector<8x128xf32>
    %99 = math.tanh %98 : vector<8x128xf32>
    %100 = arith.subf %77, %99 : vector<8x128xf32>
    %101 = arith.mulf %93, %100 : vector<8x128xf32>
    %102 = arith.addf %99, %101 : vector<8x128xf32>
    %103 = arith.index_cast %79 : i32 to index
    %c0_36 = arith.constant 0 : index
    %104 = vector.load %arg12[%103, %c0_36] : memref<32x128xf32, #tpu.memory_space<vmem>>, vector<8x128xf32>
    tpu.vector_store %arg12[%103, %c0_36], %102 {strides = array<i32>} : memref<32x128xf32, #tpu.memory_space<vmem>>, vector<8x128xf32>,
    %c4_i32_37 = arith.constant 4 : i32
    %105 = arith.muli %arg1, %c4_i32_37 : i32
    %106 = arith.addi %105, %c2_i32 : i32
    %c10_i32_38 = arith.constant 10 : i32
    %107 = arith.cmpi slt, %106, %c10_i32_38 : i32
    %108 = arith.select %107, %102, %77 : vector<8x128xf32>
    %c3_i32 = arith.constant 3 : i32
    %c8_i32_39 = arith.constant 8 : i32
    %109 = arith.muli %c3_i32, %c8_i32_39 : i32
    %110 = tpu.assume_multiple %109, 8 : i32
    %111 = arith.index_cast %110 : i32 to index
    %c0_40 = arith.constant 0 : index
    %112 = vector.load %arg11[%111, %c0_40] : memref<32x384xf32, #tpu.memory_space<vmem>>, vector<8x384xf32>
    %c0_41 = arith.constant 0 : index
    %c0_42 = arith.constant 0 : index
    %113 = vector.load %arg4[%c0_41, %c0_42] : memref<128x384xf32, #tpu.memory_space<vmem>>, vector<128x384xf32>
    %cst_43 = arith.constant dense<0.000000e+00> : vector<8x384xf32>
    %114 = tpu.matmul %108, %113, %cst_43 {dimension_numbers = #tpu.dot_dimension_numbers<[1], [0], [0], [1], [0, 0, 1, 1], [], []>} : vector<8x128xf32>, vector<128x384xf32>, vector<8x384xf32> -> vector<8x384xf32>
    %115 = vector.extract_strided_slice %112 {offsets = [0, 0], sizes = [8, 256], strides = [1, 1]} : vector<8x384xf32> to vector<8x256xf32>
    %116 = vector.extract_strided_slice %114 {offsets = [0, 0], sizes = [8, 256], strides = [1, 1]} : vector<8x384xf32> to vector<8x256xf32>
    %117 = arith.addf %115, %116 : vector<8x256xf32>
    %118 = arith.negf %117 : vector<8x256xf32>
    %119 = math.exp %118 : vector<8x256xf32>
    %cst_44 = arith.constant 1.000000e+00 : f32
    %120 = vector.broadcast %cst_44 : f32 to vector<8x256xf32>
    %121 = arith.addf %120, %119 : vector<8x256xf32>
    %122 = arith.divf %120, %121 : vector<8x256xf32>
    %123 = vector.extract_strided_slice %122 {offsets = [0, 0], sizes = [8, 128], strides = [1, 1]} : vector<8x256xf32> to vector<8x128xf32>
    %124 = vector.extract_strided_slice %122 {offsets = [0, 128], sizes = [8, 128], strides = [1, 1]} : vector<8x256xf32> to vector<8x128xf32>
    %125 = vector.extract_strided_slice %112 {offsets = [0, 256], sizes = [8, 128], strides = [1, 1]} : vector<8x384xf32> to vector<8x128xf32>
    %126 = vector.extract_strided_slice %114 {offsets = [0, 256], sizes = [8, 128], strides = [1, 1]} : vector<8x384xf32> to vector<8x128xf32>
    %127 = arith.addf %126, %13 : vector<8x128xf32>
    %128 = arith.mulf %123, %127 : vector<8x128xf32>
    %129 = arith.addf %125, %128 : vector<8x128xf32>
    %130 = math.tanh %129 : vector<8x128xf32>
    %131 = arith.subf %108, %130 : vector<8x128xf32>
    %132 = arith.mulf %124, %131 : vector<8x128xf32>
    %133 = arith.addf %130, %132 : vector<8x128xf32>
    %134 = arith.index_cast %110 : i32 to index
    %c0_45 = arith.constant 0 : index
    %135 = vector.load %arg12[%134, %c0_45] : memref<32x128xf32, #tpu.memory_space<vmem>>, vector<8x128xf32>
    tpu.vector_store %arg12[%134, %c0_45], %133 {strides = array<i32>} : memref<32x128xf32, #tpu.memory_space<vmem>>, vector<8x128xf32>,
    %c4_i32_46 = arith.constant 4 : i32
    %136 = arith.muli %arg1, %c4_i32_46 : i32
    %137 = arith.addi %136, %c3_i32 : i32
    %c10_i32_47 = arith.constant 10 : i32
    %138 = arith.cmpi slt, %137, %c10_i32_47 : i32
    %139 = arith.select %138, %133, %108 : vector<8x128xf32>
    %c4_i32_48 = arith.constant 4 : i32
    %c0_49 = arith.constant 0 : index
    %c0_50 = arith.constant 0 : index
    %c0_51 = arith.constant 0 : index
    %140 = vector.load %arg10[%c0_49, %c0_50, %c0_51] : memref<1x8x128xf32, #tpu.memory_space<vmem>>, vector<1x8x128xf32>
    %141 = vector.shape_cast %140 : vector<1x8x128xf32> to vector<8x128xf32>
    %142 = vector.shape_cast %139 : vector<8x128xf32> to vector<1x8x128xf32>
    tpu.vector_store %arg10[%c0_49, %c0_50, %c0_51], %142 {strides = array<i32>} : memref<1x8x128xf32, #tpu.memory_space<vmem>>, vector<1x8x128xf32>,
    %c0_52 = arith.constant 0 : index
    %c0_53 = arith.constant 0 : index
    %143 = vector.load %arg12[%c0_52, %c0_53] : memref<32x128xf32, #tpu.memory_space<vmem>>, vector<32x128xf32>
    %c0_54 = arith.constant 0 : index
    %c0_55 = arith.constant 0 : index
    %144 = vector.load %arg7[%c0_54, %c0_55] : memref<128x128xf32, #tpu.memory_space<vmem>>, vector<128x128xf32>
    %cst_56 = arith.constant dense<0.000000e+00> : vector<32x128xf32>
    %145 = tpu.matmul %143, %144, %cst_56 {dimension_numbers = #tpu.dot_dimension_numbers<[1], [0], [0], [1], [0, 0, 1, 1], [], []>} : vector<32x128xf32>, vector<128x128xf32>, vector<32x128xf32> -> vector<32x128xf32>
    %c0_57 = arith.constant 0 : index
    %c0_58 = arith.constant 0 : index
    %146 = vector.load %arg8[%c0_57, %c0_58] : memref<1x128xf32, #tpu.memory_space<vmem>>, vector<1x128xf32>
    %147 = vector.broadcast %146 : vector<1x128xf32> to vector<32x128xf32>
    %148 = arith.addf %145, %147 : vector<32x128xf32>
    %c0_59 = arith.constant 0 : index
    %c0_60 = arith.constant 0 : index
    %c0_61 = arith.constant 0 : index
    %149 = vector.load %arg9[%c0_59, %c0_60, %c0_61] : memref<1x32x128xf32, #tpu.memory_space<vmem>>, vector<1x32x128xf32>
    %150 = vector.shape_cast %149 : vector<1x32x128xf32> to vector<32x128xf32>
    %151 = vector.shape_cast %148 : vector<32x128xf32> to vector<1x32x128xf32>
    tpu.vector_store %arg9[%c0_59, %c0_60, %c0_61], %151 {strides = array<i32>} : memref<1x32x128xf32, #tpu.memory_space<vmem>>, vector<1x32x128xf32>,
    return
  }
  func.func @transform_0(%arg0: i32, %arg1: i32) -> (i32, i32, i32) {
    %c0_i32 = arith.constant 0 : i32
    %c0_i32_0 = arith.constant 0 : i32
    return %arg0, %arg1, %c0_i32 : i32, i32, i32
  }
  func.func @transform_1(%arg0: i32, %arg1: i32) -> (i32, i32) {
    %c0_i32 = arith.constant 0 : i32
    %c0_i32_0 = arith.constant 0 : i32
    %c0_i32_1 = arith.constant 0 : i32
    return %c0_i32, %c0_i32_0 : i32, i32
  }
  func.func @transform_2(%arg0: i32, %arg1: i32) -> (i32, i32) {
    %c0_i32 = arith.constant 0 : i32
    %c0_i32_0 = arith.constant 0 : i32
    %c0_i32_1 = arith.constant 0 : i32
    return %c0_i32, %c0_i32_0 : i32, i32
  }
  func.func @transform_3(%arg0: i32, %arg1: i32) -> (i32, i32) {
    %c0_i32 = arith.constant 0 : i32
    %c0_i32_0 = arith.constant 0 : i32
    %c0_i32_1 = arith.constant 0 : i32
    return %c0_i32, %c0_i32_0 : i32, i32
  }
  func.func @transform_4(%arg0: i32, %arg1: i32) -> (i32, i32) {
    %c0_i32 = arith.constant 0 : i32
    %c0_i32_0 = arith.constant 0 : i32
    %c0_i32_1 = arith.constant 0 : i32
    return %c0_i32, %c0_i32_0 : i32, i32
  }
  func.func @transform_5(%arg0: i32, %arg1: i32) -> (i32, i32) {
    %c0_i32 = arith.constant 0 : i32
    %c0_i32_0 = arith.constant 0 : i32
    %c0_i32_1 = arith.constant 0 : i32
    return %c0_i32, %c0_i32_0 : i32, i32
  }
  func.func @transform_6(%arg0: i32, %arg1: i32) -> (i32, i32) {
    %c0_i32 = arith.constant 0 : i32
    %c0_i32_0 = arith.constant 0 : i32
    %c0_i32_1 = arith.constant 0 : i32
    return %c0_i32, %c0_i32_0 : i32, i32
  }
  func.func @transform_7(%arg0: i32, %arg1: i32) -> (i32, i32, i32) {
    %c0_i32 = arith.constant 0 : i32
    %c0_i32_0 = arith.constant 0 : i32
    return %arg0, %arg1, %c0_i32 : i32, i32, i32
  }
  func.func @transform_8(%arg0: i32, %arg1: i32) -> (i32, i32, i32) {
    %c0_i32 = arith.constant 0 : i32
    %c0_i32_0 = arith.constant 0 : i32
    %c0_i32_1 = arith.constant 0 : i32
    return %arg0, %c0_i32, %c0_i32_0 : i32, i32, i32
  }
}

</mosaic_0001>

<llo_original>
// kernel: tpu_custom_call.1
$region0: #{tpu_custom_call.1}
  #allocation0 [shape = 'u32[]', space=smem, size = 0x4, offset = 0x4, fixed_abs, tag = 'smem constant byte address 0x4 - core index']
  #allocation1 [shape = 'u32[144,128]{1,0:T(1,128)}', space=vmem, size = 0x12000, scoped, tag = 'internal scratch']
  #allocation2 [shape = 'f32[32,384]{1,0:T(8,128)}', space=vmem, size = 0xc000, scoped, tag = 'scratch operand']
  #allocation3 [shape = 'f32[32,128]{1,0:T(8,128)}', space=vmem, size = 0x4000, scoped, tag = 'scratch operand']
  %s0 = inlined_call_operand.vmem [shape: f32[2,96,16], index: 0, kind: input, shape index: {}]
  %s1 = inlined_call_operand.vmem [shape: f32[16,384], index: 1, kind: input, shape index: {}]
  %s2 = inlined_call_operand.hbm [shape: f32[128,384], index: 2, kind: input, shape index: {}]
  %s3 = inlined_call_operand.vmem [shape: f32[1,384], index: 3, kind: input, shape index: {}]
  %s4 = inlined_call_operand.vmem [shape: f32[1,128], index: 4, kind: input, shape index: {}]
  %s5 = inlined_call_operand.vmem [shape: f32[128,128], index: 5, kind: input, shape index: {}]
  %s6 = inlined_call_operand.vmem [shape: f32[1,128], index: 6, kind: input, shape index: {}]
  %s7 = inlined_call_operand.hbm [shape: f32[2,96,128], index: 7, kind: output, shape index: {0}]
  %s8 = inlined_call_operand.hbm [shape: f32[2,8,128], index: 8, kind: output, shape index: {1}]
  %9 = xla_tuple %s7, %s8
  %s10 = sld [smem:[#allocation0]]
  $region77: #{tpu_custom_call.1} parent=0
    _
  %s12 = ssub.s32 1, %s10
  %s13 = scalar_select 0, %s12, %s10
  $region1: #{tpu_custom_call.1} parent=0
    #allocation4 [shape = 'u8[196608]{0}', space=vmem, size = 0x30000, scoped, tag = 'input window, operand 2, single buffered']
    #allocation5 [shape = 's32[2]{0}', space=sflag, size = 0x8, scoped, tag = 'scoped memory for tpu_custom_call.1']
    #allocation6 [shape = 's32[2]{0}', space=sflag, size = 0x8, scoped, tag = 'scoped memory for tpu_custom_call.1']
    #allocation7 [shape = 'u8[32768]{0}', space=vmem, size = 0x8000, scoped, tag = 'output window, operand 0']
    #allocation8 [shape = 'u8[8192]{0}', space=vmem, size = 0x2000, scoped, tag = 'output window, operand 1']
    #allocation9 [shape = 's32[2]{0}', space=sflag, size = 0x8, scoped, tag = 'scoped memory for tpu_custom_call.1']
    %14 = vsyncpa [#allocation5], 0
    %15 = vsyncpa [#allocation6], 0
    %s16 = scalar_lea.sflag [#allocation6], 1
    %17 = vsyncpa %s16, 0
    %18 = vsyncpa [#allocation9], 0
    %s19 = scalar_lea.sflag [#allocation9], 1
    %20 = vsyncpa %s19, 0
    loop: start=0, step=1, limit=8
    $region2: #{tpu_custom_call.1} parent=1 // loop_pre_header
      _
    $region3: #{tpu_custom_call.1} parent=1 // loop_header
      %s22 = sphi 0, %s26
      %p23 = scmp.ge.s32.totalorder %s22, 8
      %s29 = sphi 0, %s41
      %s30 = sphi 0, %s37
      %s31 = sphi 0, %s29
      %s32 = sphi 0, %s30
      %s33 = sphi 0, %s31
      %s34 = sphi 0, %s32
      %s46 = sphi 0, %s48
      %s49 = sphi 0, %s46
      %s50 = sphi 0, %s49
      %s66 = sphi 0, %s50
      %s70 = sphi 0, %s70
      %s72 = sphi 0, %s70
      %s73 = sphi 0, %s72
      %s87 = sphi 0, %s73
      %s91 = sphi 0, %s91
      %s93 = sphi 0, %s91
      %s94 = sphi 0, %s93
      %s108 = sphi 0, %s94
      %s112 = sphi 0, %s112
      %s114 = sphi 0, %s112
      %s115 = sphi 0, %s114
      %s129 = sphi 0, %s115
      %s133 = sphi 0, %s133
      %s135 = sphi 0, %s133
      %s136 = sphi 0, %s135
      %s150 = sphi 0, %s136
      %s154 = sphi 0, %s154
      %s156 = sphi 0, %s154
      %s157 = sphi 0, %s156
      %s171 = sphi 0, %s157
      %s175 = sphi 0, %s175
      %s177 = sphi 0, %s175
      %s178 = sphi 0, %s177
      %s192 = sphi 0, %s178
      %s200 = sphi 0, %s202
      %s203 = sphi 0, %s200
      %s204 = sphi 0, %s203
      %s220 = sphi 0, %s204
      %s226 = sphi 0, %s228
      %s229 = sphi 0, %s226
      %s230 = sphi 0, %s229
      %s246 = sphi 0, %s230
    $region4: #{tpu_custom_call.1} parent=1 // loop_header_branch
      %25 = sbr.rel (%p23) target = $region8
    $region5: #{tpu_custom_call.1} parent=1 // loop_body
      %s27 = ssub.s32 %s22, 1
      %s28 = ssub.s32 %s22, 2
      %s35 = sadd.s32 1, %s30
      %p36 = scmp.ge.s32.totalorder %s35, 3
      %s37 = scalar_select %p36, 0, %s35
      %s38 = sadd.s32 1, %s29
      %s39 = scalar_select %p36, %s38, %s29
      %p40 = scmp.ge.s32.totalorder %s39, 2
      %s41 = scalar_select %p40, 0, %s39
      %s42 = ssub.s32 %s29, %s41
      %s43 = ssub.s32 %s30, %s37
      %s44 = sor.u32 %s42, %s43
      %p45 = scmp.eq.s32.totalorder %s44, 0
      %s47 = sadd.s32 %s46, 1
      %s48 = scalar_select %p45, %s46, %s47
      %p51 = pneg %p45
      %p52 = scmp.eq.s32.totalorder %s22, 5
      %p53 = por %p51, %p52
      %p54 = scmp.ne.s32.totalorder %s46, %s49
      %p55 = scmp.eq.s32.totalorder %s22, 0
      %p56 = por %p54, %p55
      %p57 = scmp.ne.s32.totalorder %s46, %s49
      %p58 = scmp.eq.s32.totalorder %s27, 5
      %p59 = por %p57, %p58
      %p60 = scmp.ne.s32.totalorder %s49, %s50
      %p61 = scmp.eq.s32.totalorder %s27, 0
      %p62 = por %p60, %p61
      %p63 = scmp.ne.s32.totalorder %s49, %s50
      %p64 = scmp.eq.s32.totalorder %s28, 5
      %p65 = por %p63, %p64
      %p67 = scmp.ne.s32.totalorder %s50, %s66
      %p68 = scmp.eq.s32.totalorder %s28, 0
      %p69 = por %p67, %p68
      %s71 = sadd.s32 %s70, 1
      %p74 = scmp.eq.s32.totalorder %s22, 5
      %p75 = scmp.ne.s32.totalorder %s70, %s72
      %p76 = scmp.eq.s32.totalorder %s22, 0
      %p77 = por %p75, %p76
      %p78 = scmp.ne.s32.totalorder %s70, %s72
      %p79 = scmp.eq.s32.totalorder %s27, 5
      %p80 = por %p78, %p79
      %p81 = scmp.ne.s32.totalorder %s72, %s73
      %p82 = scmp.eq.s32.totalorder %s27, 0
      %p83 = por %p81, %p82
      %p84 = scmp.ne.s32.totalorder %s72, %s73
      %p85 = scmp.eq.s32.totalorder %s28, 5
      %p86 = por %p84, %p85
      %p88 = scmp.ne.s32.totalorder %s73, %s87
      %p89 = scmp.eq.s32.totalorder %s28, 0
      %p90 = por %p88, %p89
      %s92 = sadd.s32 %s91, 1
      %p95 = scmp.eq.s32.totalorder %s22, 5
      %p96 = scmp.ne.s32.totalorder %s91, %s93
      %p97 = scmp.eq.s32.totalorder %s22, 0
      %p98 = por %p96, %p97
      %p99 = scmp.ne.s32.totalorder %s91, %s93
      %p100 = scmp.eq.s32.totalorder %s27, 5
      %p101 = por %p99, %p100
      %p102 = scmp.ne.s32.totalorder %s93, %s94
      %p103 = scmp.eq.s32.totalorder %s27, 0
      %p104 = por %p102, %p103
      %p105 = scmp.ne.s32.totalorder %s93, %s94
      %p106 = scmp.eq.s32.totalorder %s28, 5
      %p107 = por %p105, %p106
      %p109 = scmp.ne.s32.totalorder %s94, %s108
      %p110 = scmp.eq.s32.totalorder %s28, 0
      %p111 = por %p109, %p110
      %s113 = sadd.s32 %s112, 1
      %p116 = scmp.eq.s32.totalorder %s22, 5
      %p117 = scmp.ne.s32.totalorder %s112, %s114
      %p118 = scmp.eq.s32.totalorder %s22, 0
      %p119 = por %p117, %p118
      %p120 = scmp.ne.s32.totalorder %s112, %s114
      %p121 = scmp.eq.s32.totalorder %s27, 5
      %p122 = por %p120, %p121
      %p123 = scmp.ne.s32.totalorder %s114, %s115
      %p124 = scmp.eq.s32.totalorder %s27, 0
      %p125 = por %p123, %p124
      %p126 = scmp.ne.s32.totalorder %s114, %s115
      %p127 = scmp.eq.s32.totalorder %s28, 5
      %p128 = por %p126, %p127
      %p130 = scmp.ne.s32.totalorder %s115, %s129
      %p131 = scmp.eq.s32.totalorder %s28, 0
      %p132 = por %p130, %p131
      %s134 = sadd.s32 %s133, 1
      %p137 = scmp.eq.s32.totalorder %s22, 5
      %p138 = scmp.ne.s32.totalorder %s133, %s135
      %p139 = scmp.eq.s32.totalorder %s22, 0
      %p140 = por %p138, %p139
      %p141 = scmp.ne.s32.totalorder %s133, %s135
      %p142 = scmp.eq.s32.totalorder %s27, 5
      %p143 = por %p141, %p142
      %p144 = scmp.ne.s32.totalorder %s135, %s136
      %p145 = scmp.eq.s32.totalorder %s27, 0
      %p146 = por %p144, %p145
      %p147 = scmp.ne.s32.totalorder %s135, %s136
      %p148 = scmp.eq.s32.totalorder %s28, 5
      %p149 = por %p147, %p148
      %p151 = scmp.ne.s32.totalorder %s136, %s150
      %p152 = scmp.eq.s32.totalorder %s28, 0
      %p153 = por %p151, %p152
      %s155 = sadd.s32 %s154, 1
      %p158 = scmp.eq.s32.totalorder %s22, 5
      %p159 = scmp.ne.s32.totalorder %s154, %s156
      %p160 = scmp.eq.s32.totalorder %s22, 0
      %p161 = por %p159, %p160
      %p162 = scmp.ne.s32.totalorder %s154, %s156
      %p163 = scmp.eq.s32.totalorder %s27, 5
      %p164 = por %p162, %p163
      %p165 = scmp.ne.s32.totalorder %s156, %s157
      %p166 = scmp.eq.s32.totalorder %s27, 0
      %p167 = por %p165, %p166
      %p168 = scmp.ne.s32.totalorder %s156, %s157
      %p169 = scmp.eq.s32.totalorder %s28, 5
      %p170 = por %p168, %p169
      %p172 = scmp.ne.s32.totalorder %s157, %s171
      %p173 = scmp.eq.s32.totalorder %s28, 0
      %p174 = por %p172, %p173
      %s176 = sadd.s32 %s175, 1
      %p179 = scmp.eq.s32.totalorder %s22, 5
      %p180 = scmp.ne.s32.totalorder %s175, %s177
      %p181 = scmp.eq.s32.totalorder %s22, 0
      %p182 = por %p180, %p181
      %p183 = scmp.ne.s32.totalorder %s175, %s177
      %p184 = scmp.eq.s32.totalorder %s27, 5
      %p185 = por %p183, %p184
      %p186 = scmp.ne.s32.totalorder %s177, %s178
      %p187 = scmp.eq.s32.totalorder %s27, 0
      %p188 = por %p186, %p187
      %p189 = scmp.ne.s32.totalorder %s177, %s178
      %p190 = scmp.eq.s32.totalorder %s28, 5
      %p191 = por %p189, %p190
      %p193 = scmp.ne.s32.totalorder %s178, %s192
      %p194 = scmp.eq.s32.totalorder %s28, 0
      %p195 = por %p193, %p194
      %s196 = ssub.s32 %s29, %s41
      %s197 = ssub.s32 %s30, %s37
      %s198 = sor.u32 %s196, %s197
      %p199 = scmp.eq.s32.totalorder %s198, 0
      %s201 = sadd.s32 %s200, 1
      %s202 = scalar_select %p199, %s200, %s201
      %p205 = pneg %p199
      %p206 = scmp.eq.s32.totalorder %s22, 5
      %p207 = por %p205, %p206
      %p208 = scmp.ne.s32.totalorder %s200, %s203
      %p209 = scmp.eq.s32.totalorder %s22, 0
      %p210 = por %p208, %p209
      %p211 = scmp.ne.s32.totalorder %s200, %s203
      %p212 = scmp.eq.s32.totalorder %s27, 5
      %p213 = por %p211, %p212
      %p214 = scmp.ne.s32.totalorder %s203, %s204
      %p215 = scmp.eq.s32.totalorder %s27, 0
      %p216 = por %p214, %p215
      %p217 = scmp.ne.s32.totalorder %s203, %s204
      %p218 = scmp.eq.s32.totalorder %s28, 5
      %p219 = por %p217, %p218
      %p221 = scmp.ne.s32.totalorder %s204, %s220
      %p222 = scmp.eq.s32.totalorder %s28, 0
      %p223 = por %p221, %p222
      %s224 = ssub.s32 %s29, %s41
      %p225 = scmp.eq.s32.totalorder %s224, 0
      %s227 = sadd.s32 %s226, 1
      %s228 = scalar_select %p225, %s226, %s227
      %p231 = pneg %p225
      %p232 = scmp.eq.s32.totalorder %s22, 5
      %p233 = por %p231, %p232
      %p234 = scmp.ne.s32.totalorder %s226, %s229
      %p235 = scmp.eq.s32.totalorder %s22, 0
      %p236 = por %p234, %p235
      %p237 = scmp.ne.s32.totalorder %s226, %s229
      %p238 = scmp.eq.s32.totalorder %s27, 5
      %p239 = por %p237, %p238
      %p240 = scmp.ne.s32.totalorder %s229, %s230
      %p241 = scmp.eq.s32.totalorder %s27, 0
      %p242 = por %p240, %p241
      %p243 = scmp.ne.s32.totalorder %s229, %s230
      %p244 = scmp.eq.s32.totalorder %s28, 5
      %p245 = por %p243, %p244
      %p247 = scmp.ne.s32.totalorder %s230, %s246
      %p248 = scmp.eq.s32.totalorder %s28, 0
      %p249 = por %p247, %p248
      %p250 = scmp.le.s32.totalorder 1, %s22
      %p251 = scmp.lt.s32.totalorder %s22, 7
      %p252 = pnand %p250, %p251
      %p253 = pneg %p252
      // Predicated region
      $region9: #{tpu_custom_call.1} parent=5 // pred_check
        _
      $region10: #{tpu_custom_call.1} parent=5 // pred_check_branch
        %255 = sbr.rel (%p252) target = $region12
      $region11: #{tpu_custom_call.1} parent=5 // pred_region
        %s256 = ssub.s32 %s22, 1
        // Predicated region
        $region13: #{tpu_custom_call.1} parent=11 // pred_check
          %p257 = pneg %p83
        $region14: #{tpu_custom_call.1} parent=11 // pred_check_branch
          %259 = sbr.rel (%p257) target = $region16
        $region15: #{tpu_custom_call.1} parent=11 // pred_region
          _
        $region16: #{tpu_custom_call.1} parent=11 // pred_fallthru
          _
        // Predicated region
        $region17: #{tpu_custom_call.1} parent=11 // pred_check
          %p260 = pneg %p104
        $region18: #{tpu_custom_call.1} parent=11 // pred_check_branch
          %262 = sbr.rel (%p260) target = $region20
        $region19: #{tpu_custom_call.1} parent=11 // pred_region
          %s264 = ssub.s32 6144, 6144
          %265 = vsyncadd [#allocation5], %s264
          %s266 = sshll.u32 [#allocation4], 4
          %s267 = int_to_ptr.vmem [resolvable:$true] %s266
          %272 = dma.hbm_to_vmem [thread:$0]  %s2, 6144, %s267, [#allocation5], 384, 384, 24
        $region20: #{tpu_custom_call.1} parent=11 // pred_fallthru
          _
        // Predicated region
        $region21: #{tpu_custom_call.1} parent=11 // pred_check
          %p273 = pneg %p125
        $region22: #{tpu_custom_call.1} parent=11 // pred_check_branch
          %275 = sbr.rel (%p273) target = $region24
        $region23: #{tpu_custom_call.1} parent=11 // pred_region
          _
        $region24: #{tpu_custom_call.1} parent=11 // pred_fallthru
          _
        // Predicated region
        $region25: #{tpu_custom_call.1} parent=11 // pred_check
          %p276 = pneg %p146
        $region26: #{tpu_custom_call.1} parent=11 // pred_check_branch
          %278 = sbr.rel (%p276) target = $region28
        $region27: #{tpu_custom_call.1} parent=11 // pred_region
          _
        $region28: #{tpu_custom_call.1} parent=11 // pred_fallthru
          _
        // Predicated region
        $region29: #{tpu_custom_call.1} parent=11 // pred_check
          %p279 = pneg %p167
        $region30: #{tpu_custom_call.1} parent=11 // pred_check_branch
          %281 = sbr.rel (%p279) target = $region32
        $region31: #{tpu_custom_call.1} parent=11 // pred_region
          _
        $region32: #{tpu_custom_call.1} parent=11 // pred_fallthru
          _
        // Predicated region
        $region33: #{tpu_custom_call.1} parent=11 // pred_check
          %p282 = pneg %p188
        $region34: #{tpu_custom_call.1} parent=11 // pred_check_branch
          %284 = sbr.rel (%p282) target = $region36
        $region35: #{tpu_custom_call.1} parent=11 // pred_region
          _
        $region36: #{tpu_custom_call.1} parent=11 // pred_fallthru
          _
      $region12: #{tpu_custom_call.1} parent=5 // pred_fallthru
        _
      %p285 = scmp.lt.s32.totalorder %s22, 6
      // Predicated region
      $region37: #{tpu_custom_call.1} parent=5 // pred_check
        %p286 = pneg %p285
      $region38: #{tpu_custom_call.1} parent=5 // pred_check_branch
        %288 = sbr.rel (%p286) target = $region40
      $region39: #{tpu_custom_call.1} parent=5 // pred_region
        // Predicated region
        $region41: #{tpu_custom_call.1} parent=39 // pred_check
          %p289 = pneg %p56
        $region42: #{tpu_custom_call.1} parent=39 // pred_check_branch
          %291 = sbr.rel (%p289) target = $region44
        $region43: #{tpu_custom_call.1} parent=39 // pred_region
          %s292 = smul.u32 4, %s30
          %p293 = scmp.lt.s32.totalorder %s29, 1
          %s294 = scalar_select %p293, %s29, 1
          %p295 = scmp.lt.s32.totalorder %s292, 11
          %s296 = scalar_select %p295, %s292, 11
          %s297 = smul.addr %s294, 12
          %s298 = sadd.s32 %s296, %s297
          %s299 = smul.addr %s298, 8
          %s300 = scalar_lea.vmem %s0, %s299
          %s301 = smul.u32 4, %s30
        $region44: #{tpu_custom_call.1} parent=39 // pred_fallthru
          _
      $region40: #{tpu_custom_call.1} parent=5 // pred_fallthru
        _
      %p302 = scmp.le.s32.totalorder 1, %s22
      %p303 = scmp.lt.s32.totalorder %s22, 7
      %p304 = pnand %p302, %p303
      %p305 = pneg %p304
      // Predicated region
      $region45: #{tpu_custom_call.1} parent=5 // pred_check
        _
      $region46: #{tpu_custom_call.1} parent=5 // pred_check_branch
        %307 = sbr.rel (%p304) target = $region48
      $region47: #{tpu_custom_call.1} parent=5 // pred_region
        %s308 = ssub.s32 %s22, 1
        // Predicated region
        $region49: #{tpu_custom_call.1} parent=47 // pred_check
          %p309 = pneg %p104
        $region50: #{tpu_custom_call.1} parent=47 // pred_check_branch
          %311 = sbr.rel (%p309) target = $region52
        $region51: #{tpu_custom_call.1} parent=47 // pred_region
          %312 = dma.done [#allocation5], 6144
        $region52: #{tpu_custom_call.1} parent=47 // pred_fallthru
          _
        %s313 = smul.u32 4, %s32
        %p314 = scmp.lt.s32.totalorder %s31, 1
        %s315 = scalar_select %p314, %s31, 1
        %p316 = scmp.lt.s32.totalorder %s313, 11
        %s317 = scalar_select %p316, %s313, 11
        %s318 = smul.addr %s315, 12
        %s319 = sadd.s32 %s317, %s318
        %s320 = smul.addr %s319, 8
        %s321 = scalar_lea.vmem %s0, %s320
        %p322 = pneg %p62
        %p323 = pneg %p59
        %p324 = pneg %p83
        %p325 = pneg %p80
        %p326 = pneg %p104
        %p327 = pneg %p101
        %p328 = pneg %p125
        %p329 = pneg %p122
        %p330 = pneg %p146
        %p331 = pneg %p143
        %p332 = pneg %p167
        %p333 = pneg %p164
        %p334 = pneg %p188
        %p335 = pneg %p185
        %p336 = pneg %p216
        %p337 = pneg %p213
        %s338 = sand.u32 %s203, 1
        %s339 = scalar_lea.sflag [#allocation6], %s338
        %s340 = sand.u32 %s203, 1
        %s341 = smul.addr %s340, 32
        %s342 = scalar_lea.vmem [#allocation7], %s341
        %p343 = pneg %p242
        %p344 = pneg %p239
        %s345 = sand.u32 %s229, 1
        %s346 = scalar_lea.sflag [#allocation9], %s345
        %s347 = sand.u32 %s229, 1
        %s348 = smul.addr %s347, 8
        %s349 = scalar_lea.vmem [#allocation8], %s348
        %s350 = smul.u32 4, %s32
        %p351 = scmp.lt.s32.totalorder %s31, 1
        %s352 = scalar_select %p351, %s31, 1
        %p353 = scmp.lt.s32.totalorder %s350, 11
        %s354 = scalar_select %p353, %s350, 11
        %s355 = smul.addr %s352, 12
        %s356 = sadd.s32 %s354, %s355
        %s357 = smul.addr %s356, 8
        %s358 = scalar_lea.vmem %s0, %s357
        %s359 = smul.u32 4, %s32
        %s360 = smul.u32 4, %s32
        %p361 = scmp.eq.s32.totalorder %s32, 0
        // Predicated region
        $region53: #{tpu_custom_call.1} parent=47 // pred_check
          %p362 = pneg %p361
        $region54: #{tpu_custom_call.1} parent=47 // pred_check_branch
          %364 = sbr.rel (%p362) target = $region56
        $region55: #{tpu_custom_call.1} parent=47 // pred_region
          %365 = vst [vmem:[%s349] sm:$0xff] 0.0
        $region56: #{tpu_custom_call.1} parent=47 // pred_fallthru
          _
        %v366 = vld [vmem:[%s358] sm:$0xff]
        %v367 = vld [vmem:[%s358 + $0x8] sm:$0xff]
        %v368 = vld [vmem:[%s358 + $0x10] sm:$0xff]
        %v369 = vld [vmem:[%s358 + $0x18] sm:$0xff]
        %v370 = vld [vmem:[%s1] sm:$0xff]
        %v371 = vld [vmem:[%s1 + $0x8] sm:$0xff]
        %v372 = vld [vmem:[%s1 + $0x10] sm:$0xff]
        %v373 = vld [vmem:[%s1 + $0x18] sm:$0xff]
        %v374 = vld [vmem:[%s1 + $0x20] sm:$0xff]
        %v375 = vld [vmem:[%s1 + $0x28] sm:$0xff]
        %v376 = vld [vmem:[%s3] sm:$0x7]
        %v378 = vlaneseq
        %v379 = vshrl.u32 %v378, 7
        %v380 = vsub.s32 0, %v379
        %v381 = vrot.slane %v376, %v380
        %v382 = vlaneseq
        %v383 = vshrl.u32 %v382, 7
        %v384 = vsub.s32 1, %v383
        %v385 = vrot.slane %v376, %v384
        %v386 = vlaneseq
        %v387 = vshrl.u32 %v386, 7
        %v388 = vsub.s32 2, %v387
        %v389 = vrot.slane %v376, %v388
        %vm393 = vcmask 130048
        %v395 = vsel %vm393, %v366, 0
        %v398 = vsel %vm393, %v367, 0
        %v401 = vsel %vm393, %v368, 0
        %v404 = vsel %vm393, %v369, 0
        %406 = vmatprep.subr.mxu0 %v371
        %407 = vmatpush1.msra.mxu0 %v370
        %408 = vmatprep.subr.mxu0 %v374
        %409 = vmatpush1.msra.mxu0 %v373
        %410 = vmatprep.subr.mxu0 0.0
        %411 = vmatpush1.msra.mxu0 0.0
        %412 = vmatprep.subr.mxu0 0.0
        %413 = vmatpush1.msra.mxu0 0.0
        %414 = vmatprep.subr.mxu0 0.0
        %415 = vmatpush1.msra.mxu0 0.0
        %416 = vmatprep.subr.mxu0 0.0
        %417 = vmatpush1.msra.mxu0 0.0
        %418 = vmatprep.subr.mxu0 0.0
        %419 = vmatpush1.msra.mxu0 0.0
        %420 = vmatprep.subr.mxu0 0.0
        %421 = vmatpush1.msra.mxu0 0.0
        %422 = vmatprep.subr.mxu0 0.0
        %423 = vmatpush1.msra.mxu0 0.0
        %424 = vmatprep.subr.mxu0 0.0
        %425 = vmatpush1.msra.mxu0 0.0
        %426 = vmatprep.subr.mxu0 0.0
        %427 = vmatpush1.msra.mxu0 0.0
        %428 = vmatprep.subr.mxu0 0.0
        %429 = vmatpush1.msra.mxu0 0.0
        %430 = vmatprep.subr.mxu0 0.0
        %431 = vmatpush1.msra.mxu0 0.0
        %432 = vmatprep.subr.mxu0 0.0
        %433 = vmatpush1.msra.mxu0 0.0
        %434 = vmatprep.subr.mxu0 0.0
        %435 = vmatpush1.msra.mxu0 0.0
        %436 = vmatprep.subr.mxu0 0.0
        %437 = vmatpush1.msra.mxu0 0.0
        %438 = vmatprep.subr.mxu0 0.0
        %439 = vmatpush1.msra.mxu0 0.0
        %440 = vmatprep.subr.mxu0 0.0
        %441 = vmatpush1.msra.mxu0 0.0
        %442 = vmatprep.subr.mxu0 0.0
        %443 = vmatpush1.msra.mxu0 0.0
        %444 = vmatprep.subr.mxu0 0.0
        %445 = vmatpush1.msra.mxu0 0.0
        %446 = vmatprep.subr.mxu0 0.0
        %447 = vmatpush1.msra.mxu0 0.0
        %448 = vmatprep.subr.mxu0 0.0
        %449 = vmatpush1.msra.mxu0 0.0
        %450 = vmatprep.subr.mxu0 0.0
        %451 = vmatpush1.msra.mxu0 0.0
        %452 = vmatprep.subr.mxu0 0.0
        %453 = vmatpush1.msra.mxu0 0.0
        %454 = vmatprep.subr.mxu0 0.0
        %455 = vmatpush1.msra.mxu0 0.0
        %456 = vmatprep.subr.mxu0 0.0
        %457 = vmatpush1.msra.mxu0 0.0
        %458 = vmatprep.subr.mxu0 0.0
        %459 = vmatpush1.msra.mxu0 0.0
        %460 = vmatprep.subr.mxu0 0.0
        %461 = vmatpush1.msra.mxu0 0.0
        %462 = vmatprep.subr.mxu0 0.0
        %463 = vmatpush1.msra.mxu0 0.0
        %464 = vmatprep.subr.mxu0 0.0
        %465 = vmatpush1.msra.mxu0 0.0
        %466 = vmatprep.subr.mxu0 0.0
        %467 = vmatpush1.msra.mxu0 0.0
        %468 = vmatprep.subr.mxu0 0.0
        %469 = vmatpush1.msra.mxu0 0.0
        %470 = vmatprep.mubr.f32.mxu0 0.0
        %471 = vmatmul.mubr.f32.gmra.mrb[0].mxu0 %v395
        %v472 = vpop.f32.mrb[0].mxu0
        %v473 = vadd.f32 %v381, %v472
        %v474 = vpop.f32.mrb[0].mxu0
        %v475 = vadd.f32 %v385, %v474
        %476 = vmatprep.mubr.f32.mxu0 0.0
        %477 = vmatmul.mubr.f32.gmra.mrb[0].mxu0 %v398
        %v478 = vpop.f32.mrb[0].mxu0
        %v479 = vadd.f32 %v381, %v478
        %v480 = vpop.f32.mrb[0].mxu0
        %v481 = vadd.f32 %v385, %v480
        %482 = vmatprep.mubr.f32.mxu0 0.0
        %483 = vmatmul.mubr.f32.gmra.mrb[0].mxu0 %v401
        %v484 = vpop.f32.mrb[0].mxu0
        %v485 = vadd.f32 %v381, %v484
        %v486 = vpop.f32.mrb[0].mxu0
        %v487 = vadd.f32 %v385, %v486
        %488 = vmatprep.mubr.f32.mxu0 0.0
        %489 = vmatmul.mubr.f32.gmra.mrb[0].mxu0 %v404
        %v490 = vpop.f32.mrb[0].mxu0
        %v491 = vadd.f32 %v381, %v490
        %v492 = vpop.f32.mrb[0].mxu0
        %v493 = vadd.f32 %v385, %v492
        %494 = vdwg.mxu0
        %495 = vmatprep.subr.mxu0 0.0
        %496 = vmatpush1.msra.mxu0 %v372
        %497 = vmatprep.subr.mxu0 0.0
        %498 = vmatpush1.msra.mxu0 %v375
        %499 = vmatprep.subr.mxu0 0.0
        %500 = vmatpush1.msra.mxu0 0.0
        %501 = vmatprep.subr.mxu0 0.0
        %502 = vmatpush1.msra.mxu0 0.0
        %503 = vmatprep.subr.mxu0 0.0
        %504 = vmatpush1.msra.mxu0 0.0
        %505 = vmatprep.subr.mxu0 0.0
        %506 = vmatpush1.msra.mxu0 0.0
        %507 = vmatprep.subr.mxu0 0.0
        %508 = vmatpush1.msra.mxu0 0.0
        %509 = vmatprep.subr.mxu0 0.0
        %510 = vmatpush1.msra.mxu0 0.0
        %511 = vmatprep.subr.mxu0 0.0
        %512 = vmatpush1.msra.mxu0 0.0
        %513 = vmatprep.subr.mxu0 0.0
        %514 = vmatpush1.msra.mxu0 0.0
        %515 = vmatprep.subr.mxu0 0.0
        %516 = vmatpush1.msra.mxu0 0.0
        %517 = vmatprep.subr.mxu0 0.0
        %518 = vmatpush1.msra.mxu0 0.0
        %519 = vmatprep.subr.mxu0 0.0
        %520 = vmatpush1.msra.mxu0 0.0
        %521 = vmatprep.subr.mxu0 0.0
        %522 = vmatpush1.msra.mxu0 0.0
        %523 = vmatprep.subr.mxu0 0.0
        %524 = vmatpush1.msra.mxu0 0.0
        %525 = vmatprep.subr.mxu0 0.0
        %526 = vmatpush1.msra.mxu0 0.0
        %527 = vmatprep.subr.mxu0 0.0
        %528 = vmatpush1.msra.mxu0 0.0
        %529 = vmatprep.subr.mxu0 0.0
        %530 = vmatpush1.msra.mxu0 0.0
        %531 = vmatprep.subr.mxu0 0.0
        %532 = vmatpush1.msra.mxu0 0.0
        %533 = vmatprep.subr.mxu0 0.0
        %534 = vmatpush1.msra.mxu0 0.0
        %535 = vmatprep.subr.mxu0 0.0
        %536 = vmatpush1.msra.mxu0 0.0
        %537 = vmatprep.subr.mxu0 0.0
        %538 = vmatpush1.msra.mxu0 0.0
        %539 = vmatprep.subr.mxu0 0.0
        %540 = vmatpush1.msra.mxu0 0.0
        %541 = vmatprep.subr.mxu0 0.0
        %542 = vmatpush1.msra.mxu0 0.0
        %543 = vmatprep.subr.mxu0 0.0
        %544 = vmatpush1.msra.mxu0 0.0
        %545 = vmatprep.subr.mxu0 0.0
        %546 = vmatpush1.msra.mxu0 0.0
        %547 = vmatprep.subr.mxu0 0.0
        %548 = vmatpush1.msra.mxu0 0.0
        %549 = vmatprep.subr.mxu0 0.0
        %550 = vmatpush1.msra.mxu0 0.0
        %551 = vmatprep.subr.mxu0 0.0
        %552 = vmatpush1.msra.mxu0 0.0
        %553 = vmatprep.subr.mxu0 0.0
        %554 = vmatpush1.msra.mxu0 0.0
        %555 = vmatprep.subr.mxu0 0.0
        %556 = vmatpush1.msra.mxu0 0.0
        %557 = vmatprep.subr.mxu0 0.0
        %558 = vmatpush1.msra.mxu0 0.0
        %559 = vmatprep.mubr.f32.mxu0 0.0
        %560 = vmatmul.mubr.f32.gmra.mrb[0].mxu0 %v395
        %v561 = vpop.f32.mrb[0].mxu0
        %v562 = vadd.f32 %v389, %v561
        %v563 = vpop.f32.mrb[0].mxu0
        %564 = vmatprep.mubr.f32.mxu0 0.0
        %565 = vmatmul.mubr.f32.gmra.mrb[0].mxu0 %v398
        %v566 = vpop.f32.mrb[0].mxu0
        %v567 = vadd.f32 %v389, %v566
        %v568 = vpop.f32.mrb[0].mxu0
        %569 = vmatprep.mubr.f32.mxu0 0.0
        %570 = vmatmul.mubr.f32.gmra.mrb[0].mxu0 %v401
        %v571 = vpop.f32.mrb[0].mxu0
        %v572 = vadd.f32 %v389, %v571
        %v573 = vpop.f32.mrb[0].mxu0
        %574 = vmatprep.mubr.f32.mxu0 0.0
        %575 = vmatmul.mubr.f32.gmra.mrb[0].mxu0 %v404
        %v576 = vpop.f32.mrb[0].mxu0
        %v577 = vadd.f32 %v389, %v576
        %v578 = vpop.f32.mrb[0].mxu0
        %579 = vdwg.mxu0
        %580 = vst [vmem:[#allocation2] sm:$0xff] %v473
        %581 = vst [vmem:[#allocation2 + $0x8] sm:$0xff] %v475
        %582 = vst [vmem:[#allocation2 + $0x10] sm:$0xff] %v562
        %583 = vst [vmem:[#allocation2 + $0x18] sm:$0xff] %v479
        %584 = vst [vmem:[#allocation2 + $0x20] sm:$0xff] %v481
        %585 = vst [vmem:[#allocation2 + $0x28] sm:$0xff] %v567
        %586 = vst [vmem:[#allocation2 + $0x30] sm:$0xff] %v485
        %587 = vst [vmem:[#allocation2 + $0x38] sm:$0xff] %v487
        %588 = vst [vmem:[#allocation2 + $0x40] sm:$0xff] %v572
        %589 = vst [vmem:[#allocation2 + $0x48] sm:$0xff] %v491
        %590 = vst [vmem:[#allocation2 + $0x50] sm:$0xff] %v493
        %591 = vst [vmem:[#allocation2 + $0x58] sm:$0xff] %v577
        %v592 = vld [vmem:[%s4] sm:$0x1]
        %v594 = vlaneseq
        %v595 = vshrl.u32 %v594, 7
        %v596 = vsub.s32 0, %v595
        %v597 = vrot.slane %v592, %v596
        %v599 = vld [vmem:[%s349] sm:$0xff]
        %s600 = smul.u32 0, 3
        %s601 = smul.addr %s600, 8
        %s602 = scalar_lea.vmem [#allocation2], %s601
        %v603 = vld [vmem:[%s602] sm:$0xff]
        %v604 = vld [vmem:[%s602 + $0x8] sm:$0xff]
        %v605 = vld [vmem:[%s602 + $0x10] sm:$0xff]
        %v606 = vld [vmem:[#allocation4] sm:$0xff]
        %v607 = vld [vmem:[#allocation4 + $0x8] sm:$0xff]
        %v608 = vld [vmem:[#allocation4 + $0x10] sm:$0xff]
        %v609 = vld [vmem:[#allocation4 + $0x18] sm:$0xff]
        %v610 = vld [vmem:[#allocation4 + $0x20] sm:$0xff]
        %v611 = vld [vmem:[#allocation4 + $0x28] sm:$0xff]
        %v612 = vld [vmem:[#allocation4 + $0x30] sm:$0xff]
        %v613 = vld [vmem:[#allocation4 + $0x38] sm:$0xff]
        %v614 = vld [vmem:[#allocation4 + $0x40] sm:$0xff]
        %v615 = vld [vmem:[#allocation4 + $0x48] sm:$0xff]
        %v616 = vld [vmem:[#allocation4 + $0x50] sm:$0xff]
        %v617 = vld [vmem:[#allocation4 + $0x58] sm:$0xff]
        %v618 = vld [vmem:[#allocation4 + $0x60] sm:$0xff]
        %v619 = vld [vmem:[#allocation4 + $0x68] sm:$0xff]
        %v620 = vld [vmem:[#allocation4 + $0x70] sm:$0xff]
        %v621 = vld [vmem:[#allocation4 + $0x78] sm:$0xff]
        %v622 = vld [vmem:[#allocation4 + $0x80] sm:$0xff]
        %v623 = vld [vmem:[#allocation4 + $0x88] sm:$0xff]
        %v624 = vld [vmem:[#allocation4 + $0x90] sm:$0xff]
        %v625 = vld [vmem:[#allocation4 + $0x98] sm:$0xff]
        %v626 = vld [vmem:[#allocation4 + $0xa0] sm:$0xff]
        %v627 = vld [vmem:[#allocation4 + $0xa8] sm:$0xff]
        %v628 = vld [vmem:[#allocation4 + $0xb0] sm:$0xff]
        %v629 = vld [vmem:[#allocation4 + $0xb8] sm:$0xff]
        %v630 = vld [vmem:[#allocation4 + $0xc0] sm:$0xff]
        %v631 = vld [vmem:[#allocation4 + $0xc8] sm:$0xff]
        %v632 = vld [vmem:[#allocation4 + $0xd0] sm:$0xff]
        %v633 = vld [vmem:[#allocation4 + $0xd8] sm:$0xff]
        %v634 = vld [vmem:[#allocation4 + $0xe0] sm:$0xff]
        %v635 = vld [vmem:[#allocation4 + $0xe8] sm:$0xff]
        %v636 = vld [vmem:[#allocation4 + $0xf0] sm:$0xff]
        %v637 = vld [vmem:[#allocation4 + $0xf8] sm:$0xff]
        %v638 = vld [vmem:[#allocation4 + $0x100] sm:$0xff]
        %v639 = vld [vmem:[#allocation4 + $0x108] sm:$0xff]
        %v640 = vld [vmem:[#allocation4 + $0x110] sm:$0xff]
        %v641 = vld [vmem:[#allocation4 + $0x118] sm:$0xff]
        %v642 = vld [vmem:[#allocation4 + $0x120] sm:$0xff]
        %v643 = vld [vmem:[#allocation4 + $0x128] sm:$0xff]
        %v644 = vld [vmem:[#allocation4 + $0x130] sm:$0xff]
        %v645 = vld [vmem:[#allocation4 + $0x138] sm:$0xff]
        %v646 = vld [vmem:[#allocation4 + $0x140] sm:$0xff]
        %v647 = vld [vmem:[#allocation4 + $0x148] sm:$0xff]
        %v648 = vld [vmem:[#allocation4 + $0x150] sm:$0xff]
        %v649 = vld [vmem:[#allocation4 + $0x158] sm:$0xff]
        %v650 = vld [vmem:[#allocation4 + $0x160] sm:$0xff]
        %v651 = vld [vmem:[#allocation4 + $0x168] sm:$0xff]
        %v652 = vld [vmem:[#allocation4 + $0x170] sm:$0xff]
        %v653 = vld [vmem:[#allocation4 + $0x178] sm:$0xff]
        %654 = vmatprep.subr.mxu0 %v607
        %655 = vmatpush1.msra.mxu0 %v606
        %656 = vmatprep.subr.mxu0 %v610
        %657 = vmatpush1.msra.mxu0 %v609
        %658 = vmatprep.subr.mxu0 %v613
        %659 = vmatpush1.msra.mxu0 %v612
        %660 = vmatprep.subr.mxu0 %v616
        %661 = vmatpush1.msra.mxu0 %v615
        %662 = vmatprep.subr.mxu0 %v619
        %663 = vmatpush1.msra.mxu0 %v618
        %664 = vmatprep.subr.mxu0 %v622
        %665 = vmatpush1.msra.mxu0 %v621
        %666 = vmatprep.subr.mxu0 %v625
        %667 = vmatpush1.msra.mxu0 %v624
        %668 = vmatprep.subr.mxu0 %v628
        %669 = vmatpush1.msra.mxu0 %v627
        %670 = vmatprep.subr.mxu0 %v631
        %671 = vmatpush1.msra.mxu0 %v630
        %672 = vmatprep.subr.mxu0 %v634
        %673 = vmatpush1.msra.mxu0 %v633
        %674 = vmatprep.subr.mxu0 %v637
        %675 = vmatpush1.msra.mxu0 %v636
        %676 = vmatprep.subr.mxu0 %v640
        %677 = vmatpush1.msra.mxu0 %v639
        %678 = vmatprep.subr.mxu0 %v643
        %679 = vmatpush1.msra.mxu0 %v642
        %680 = vmatprep.subr.mxu0 %v646
        %681 = vmatpush1.msra.mxu0 %v645
        %682 = vmatprep.subr.mxu0 %v649
        %683 = vmatpush1.msra.mxu0 %v648
        %684 = vmatprep.subr.mxu0 %v652
        %685 = vmatpush1.msra.mxu0 %v651
        %686 = vmatprep.subr.mxu0 0.0
        %687 = vmatpush1.msra.mxu0 0.0
        %688 = vmatprep.subr.mxu0 0.0
        %689 = vmatpush1.msra.mxu0 0.0
        %690 = vmatprep.subr.mxu0 0.0
        %691 = vmatpush1.msra.mxu0 0.0
        %692 = vmatprep.subr.mxu0 0.0
        %693 = vmatpush1.msra.mxu0 0.0
        %694 = vmatprep.subr.mxu0 0.0
        %695 = vmatpush1.msra.mxu0 0.0
        %696 = vmatprep.subr.mxu0 0.0
        %697 = vmatpush1.msra.mxu0 0.0
        %698 = vmatprep.subr.mxu0 0.0
        %699 = vmatpush1.msra.mxu0 0.0
        %700 = vmatprep.subr.mxu0 0.0
        %701 = vmatpush1.msra.mxu0 0.0
        %702 = vmatprep.subr.mxu0 0.0
        %703 = vmatpush1.msra.mxu0 0.0
        %704 = vmatprep.subr.mxu0 0.0
        %705 = vmatpush1.msra.mxu0 0.0
        %706 = vmatprep.subr.mxu0 0.0
        %707 = vmatpush1.msra.mxu0 0.0
        %708 = vmatprep.subr.mxu0 0.0
        %709 = vmatpush1.msra.mxu0 0.0
        %710 = vmatprep.subr.mxu0 0.0
        %711 = vmatpush1.msra.mxu0 0.0
        %712 = vmatprep.subr.mxu0 0.0
        %713 = vmatpush1.msra.mxu0 0.0
        %714 = vmatprep.subr.mxu0 0.0
        %715 = vmatpush1.msra.mxu0 0.0
        %716 = vmatprep.subr.mxu0 0.0
        %717 = vmatpush1.msra.mxu0 0.0
        %718 = vmatprep.mubr.f32.mxu0 0.0
        %719 = vmatmul.mubr.f32.gmra.mrb[0].mxu0 %v599
        %v720 = vpop.f32.mrb[0].mxu0
        %v721 = vadd.f32 0.0, %v720
        %v722 = vpop.f32.mrb[0].mxu0
        %v723 = vadd.f32 0.0, %v722
        %724 = vdwg.mxu0
        %725 = vmatprep.subr.mxu0 0.0
        %726 = vmatpush1.msra.mxu0 %v608
        %727 = vmatprep.subr.mxu0 0.0
        %728 = vmatpush1.msra.mxu0 %v611
        %729 = vmatprep.subr.mxu0 0.0
        %730 = vmatpush1.msra.mxu0 %v614
        %731 = vmatprep.subr.mxu0 0.0
        %732 = vmatpush1.msra.mxu0 %v617
        %733 = vmatprep.subr.mxu0 0.0
        %734 = vmatpush1.msra.mxu0 %v620
        %735 = vmatprep.subr.mxu0 0.0
        %736 = vmatpush1.msra.mxu0 %v623
        %737 = vmatprep.subr.mxu0 0.0
        %738 = vmatpush1.msra.mxu0 %v626
        %739 = vmatprep.subr.mxu0 0.0
        %740 = vmatpush1.msra.mxu0 %v629
        %741 = vmatprep.subr.mxu0 0.0
        %742 = vmatpush1.msra.mxu0 %v632
        %743 = vmatprep.subr.mxu0 0.0
        %744 = vmatpush1.msra.mxu0 %v635
        %745 = vmatprep.subr.mxu0 0.0
        %746 = vmatpush1.msra.mxu0 %v638
        %747 = vmatprep.subr.mxu0 0.0
        %748 = vmatpush1.msra.mxu0 %v641
        %749 = vmatprep.subr.mxu0 0.0
        %750 = vmatpush1.msra.mxu0 %v644
        %751 = vmatprep.subr.mxu0 0.0
        %752 = vmatpush1.msra.mxu0 %v647
        %753 = vmatprep.subr.mxu0 0.0
        %754 = vmatpush1.msra.mxu0 %v650
        %755 = vmatprep.subr.mxu0 0.0
        %756 = vmatpush1.msra.mxu0 %v653
        %757 = vmatprep.subr.mxu0 0.0
        %758 = vmatpush1.msra.mxu0 0.0
        %759 = vmatprep.subr.mxu0 0.0
        %760 = vmatpush1.msra.mxu0 0.0
        %761 = vmatprep.subr.mxu0 0.0
        %762 = vmatpush1.msra.mxu0 0.0
        %763 = vmatprep.subr.mxu0 0.0
        %764 = vmatpush1.msra.mxu0 0.0
        %765 = vmatprep.subr.mxu0 0.0
        %766 = vmatpush1.msra.mxu0 0.0
        %767 = vmatprep.subr.mxu0 0.0
        %768 = vmatpush1.msra.mxu0 0.0
        %769 = vmatprep.subr.mxu0 0.0
        %770 = vmatpush1.msra.mxu0 0.0
        %771 = vmatprep.subr.mxu0 0.0
        %772 = vmatpush1.msra.mxu0 0.0
        %773 = vmatprep.subr.mxu0 0.0
        %774 = vmatpush1.msra.mxu0 0.0
        %775 = vmatprep.subr.mxu0 0.0
        %776 = vmatpush1.msra.mxu0 0.0
        %777 = vmatprep.subr.mxu0 0.0
        %778 = vmatpush1.msra.mxu0 0.0
        %779 = vmatprep.subr.mxu0 0.0
        %780 = vmatpush1.msra.mxu0 0.0
        %781 = vmatprep.subr.mxu0 0.0
        %782 = vmatpush1.msra.mxu0 0.0
        %783 = vmatprep.subr.mxu0 0.0
        %784 = vmatpush1.msra.mxu0 0.0
        %785 = vmatprep.subr.mxu0 0.0
        %786 = vmatpush1.msra.mxu0 0.0
        %787 = vmatprep.subr.mxu0 0.0
        %788 = vmatpush1.msra.mxu0 0.0
        %789 = vmatprep.mubr.f32.mxu0 0.0
        %790 = vmatmul.mubr.f32.gmra.mrb[0].mxu0 %v599
        %v791 = vpop.f32.mrb[0].mxu0
        %v792 = vadd.f32 0.0, %v791
        %v793 = vpop.f32.mrb[0].mxu0
        %794 = vdwg.mxu0
        %v795 = vadd.f32 %v603, %v721
        %v796 = vadd.f32 %v604, %v723
        %v797 = vxor.u32 %v795, 2147483648
        %v798 = vxor.u32 %v796, 2147483648
        %v799 = vmul.f32 %v797, 1.442695
        %v800 = vpow.pop %v799
        %v801 = vmul.f32 %v798, 1.442695
        %v802 = vpow.pop %v801
        %v803 = vadd.f32 %v800, 1.0
        %v804 = vadd.f32 %v802, 1.0
        %v805 = vrcp.pop %v803
        %v806 = vmul.f32 1.0, %v805
        %v807 = vrcp.pop %v804
        %v808 = vmul.f32 1.0, %v807
        %v809 = vadd.f32 %v792, %v597
        %v810 = vmul.f32 %v806, %v809
        %v811 = vadd.f32 %v605, %v810
        %v812 = vtanh.pop %v811
        %v813 = vsub.f32 %v599, %v812
        %v814 = vmul.f32 %v808, %v813
        %v815 = vadd.f32 %v812, %v814
        %816 = vst [vmem:[#allocation3] sm:$0xff] %v815
        %s817 = smul.u32 %s32, 4
        %p818 = scmp.lt.s32.totalorder %s817, 10
        %s819 = scalar_select %p818, 1, 0
        %v820 = vstv %s819
        %vm821 = vcmp.eq.s32.totalorder %v820, 1
        %v822 = vsel %vm821, %v815, %v599
        %s823 = smul.u32 1, 3
        %s824 = smul.addr %s823, 8
        %s825 = scalar_lea.vmem [#allocation2], %s824
        %v826 = vld [vmem:[%s825] sm:$0xff]
        %v827 = vld [vmem:[%s825 + $0x8] sm:$0xff]
        %v828 = vld [vmem:[%s825 + $0x10] sm:$0xff]
        %v829 = vld [vmem:[#allocation4] sm:$0xff]
        %v830 = vld [vmem:[#allocation4 + $0x8] sm:$0xff]
        %v831 = vld [vmem:[#allocation4 + $0x10] sm:$0xff]
        %v832 = vld [vmem:[#allocation4 + $0x18] sm:$0xff]
        %v833 = vld [vmem:[#allocation4 + $0x20] sm:$0xff]
        %v834 = vld [vmem:[#allocation4 + $0x28] sm:$0xff]
        %v835 = vld [vmem:[#allocation4 + $0x30] sm:$0xff]
        %v836 = vld [vmem:[#allocation4 + $0x38] sm:$0xff]
        %v837 = vld [vmem:[#allocation4 + $0x40] sm:$0xff]
        %v838 = vld [vmem:[#allocation4 + $0x48] sm:$0xff]
        %v839 = vld [vmem:[#allocation4 + $0x50] sm:$0xff]
        %v840 = vld [vmem:[#allocation4 + $0x58] sm:$0xff]
        %v841 = vld [vmem:[#allocation4 + $0x60] sm:$0xff]
        %v842 = vld [vmem:[#allocation4 + $0x68] sm:$0xff]
        %v843 = vld [vmem:[#allocation4 + $0x70] sm:$0xff]
        %v844 = vld [vmem:[#allocation4 + $0x78] sm:$0xff]
        %v845 = vld [vmem:[#allocation4 + $0x80] sm:$0xff]
        %v846 = vld [vmem:[#allocation4 + $0x88] sm:$0xff]
        %v847 = vld [vmem:[#allocation4 + $0x90] sm:$0xff]
        %v848 = vld [vmem:[#allocation4 + $0x98] sm:$0xff]
        %v849 = vld [vmem:[#allocation4 + $0xa0] sm:$0xff]
        %v850 = vld [vmem:[#allocation4 + $0xa8] sm:$0xff]
        %v851 = vld [vmem:[#allocation4 + $0xb0] sm:$0xff]
        %v852 = vld [vmem:[#allocation4 + $0xb8] sm:$0xff]
        %v853 = vld [vmem:[#allocation4 + $0xc0] sm:$0xff]
        %v854 = vld [vmem:[#allocation4 + $0xc8] sm:$0xff]
        %v855 = vld [vmem:[#allocation4 + $0xd0] sm:$0xff]
        %v856 = vld [vmem:[#allocation4 + $0xd8] sm:$0xff]
        %v857 = vld [vmem:[#allocation4 + $0xe0] sm:$0xff]
        %v858 = vld [vmem:[#allocation4 + $0xe8] sm:$0xff]
        %v859 = vld [vmem:[#allocation4 + $0xf0] sm:$0xff]
        %v860 = vld [vmem:[#allocation4 + $0xf8] sm:$0xff]
        %v861 = vld [vmem:[#allocation4 + $0x100] sm:$0xff]
        %v862 = vld [vmem:[#allocation4 + $0x108] sm:$0xff]
        %v863 = vld [vmem:[#allocation4 + $0x110] sm:$0xff]
        %v864 = vld [vmem:[#allocation4 + $0x118] sm:$0xff]
        %v865 = vld [vmem:[#allocation4 + $0x120] sm:$0xff]
        %v866 = vld [vmem:[#allocation4 + $0x128] sm:$0xff]
        %v867 = vld [vmem:[#allocation4 + $0x130] sm:$0xff]
        %v868 = vld [vmem:[#allocation4 + $0x138] sm:$0xff]
        %v869 = vld [vmem:[#allocation4 + $0x140] sm:$0xff]
        %v870 = vld [vmem:[#allocation4 + $0x148] sm:$0xff]
        %v871 = vld [vmem:[#allocation4 + $0x150] sm:$0xff]
        %v872 = vld [vmem:[#allocation4 + $0x158] sm:$0xff]
        %v873 = vld [vmem:[#allocation4 + $0x160] sm:$0xff]
        %v874 = vld [vmem:[#allocation4 + $0x168] sm:$0xff]
        %v875 = vld [vmem:[#allocation4 + $0x170] sm:$0xff]
        %v876 = vld [vmem:[#allocation4 + $0x178] sm:$0xff]
        %877 = vmatprep.subr.mxu0 %v830
        %878 = vmatpush1.msra.mxu0 %v829
        %879 = vmatprep.subr.mxu0 %v833
        %880 = vmatpush1.msra.mxu0 %v832
        %881 = vmatprep.subr.mxu0 %v836
        %882 = vmatpush1.msra.mxu0 %v835
        %883 = vmatprep.subr.mxu0 %v839
        %884 = vmatpush1.msra.mxu0 %v838
        %885 = vmatprep.subr.mxu0 %v842
        %886 = vmatpush1.msra.mxu0 %v841
        %887 = vmatprep.subr.mxu0 %v845
        %888 = vmatpush1.msra.mxu0 %v844
        %889 = vmatprep.subr.mxu0 %v848
        %890 = vmatpush1.msra.mxu0 %v847
        %891 = vmatprep.subr.mxu0 %v851
        %892 = vmatpush1.msra.mxu0 %v850
        %893 = vmatprep.subr.mxu0 %v854
        %894 = vmatpush1.msra.mxu0 %v853
        %895 = vmatprep.subr.mxu0 %v857
        %896 = vmatpush1.msra.mxu0 %v856
        %897 = vmatprep.subr.mxu0 %v860
        %898 = vmatpush1.msra.mxu0 %v859
        %899 = vmatprep.subr.mxu0 %v863
        %900 = vmatpush1.msra.mxu0 %v862
        %901 = vmatprep.subr.mxu0 %v866
        %902 = vmatpush1.msra.mxu0 %v865
        %903 = vmatprep.subr.mxu0 %v869
        %904 = vmatpush1.msra.mxu0 %v868
        %905 = vmatprep.subr.mxu0 %v872
        %906 = vmatpush1.msra.mxu0 %v871
        %907 = vmatprep.subr.mxu0 %v875
        %908 = vmatpush1.msra.mxu0 %v874
        %909 = vmatprep.subr.mxu0 0.0
        %910 = vmatpush1.msra.mxu0 0.0
        %911 = vmatprep.subr.mxu0 0.0
        %912 = vmatpush1.msra.mxu0 0.0
        %913 = vmatprep.subr.mxu0 0.0
        %914 = vmatpush1.msra.mxu0 0.0
        %915 = vmatprep.subr.mxu0 0.0
        %916 = vmatpush1.msra.mxu0 0.0
        %917 = vmatprep.subr.mxu0 0.0
        %918 = vmatpush1.msra.mxu0 0.0
        %919 = vmatprep.subr.mxu0 0.0
        %920 = vmatpush1.msra.mxu0 0.0
        %921 = vmatprep.subr.mxu0 0.0
        %922 = vmatpush1.msra.mxu0 0.0
        %923 = vmatprep.subr.mxu0 0.0
        %924 = vmatpush1.msra.mxu0 0.0
        %925 = vmatprep.subr.mxu0 0.0
        %926 = vmatpush1.msra.mxu0 0.0
        %927 = vmatprep.subr.mxu0 0.0
        %928 = vmatpush1.msra.mxu0 0.0
        %929 = vmatprep.subr.mxu0 0.0
        %930 = vmatpush1.msra.mxu0 0.0
        %931 = vmatprep.subr.mxu0 0.0
        %932 = vmatpush1.msra.mxu0 0.0
        %933 = vmatprep.subr.mxu0 0.0
        %934 = vmatpush1.msra.mxu0 0.0
        %935 = vmatprep.subr.mxu0 0.0
        %936 = vmatpush1.msra.mxu0 0.0
        %937 = vmatprep.subr.mxu0 0.0
        %938 = vmatpush1.msra.mxu0 0.0
        %939 = vmatprep.subr.mxu0 0.0
        %940 = vmatpush1.msra.mxu0 0.0
        %941 = vmatprep.mubr.f32.mxu0 0.0
        %942 = vmatmul.mubr.f32.gmra.mrb[0].mxu0 %v822
        %v943 = vpop.f32.mrb[0].mxu0
        %v944 = vadd.f32 0.0, %v943
        %v945 = vpop.f32.mrb[0].mxu0
        %v946 = vadd.f32 0.0, %v945
        %947 = vdwg.mxu0
        %948 = vmatprep.subr.mxu0 0.0
        %949 = vmatpush1.msra.mxu0 %v831
        %950 = vmatprep.subr.mxu0 0.0
        %951 = vmatpush1.msra.mxu0 %v834
        %952 = vmatprep.subr.mxu0 0.0
        %953 = vmatpush1.msra.mxu0 %v837
        %954 = vmatprep.subr.mxu0 0.0
        %955 = vmatpush1.msra.mxu0 %v840
        %956 = vmatprep.subr.mxu0 0.0
        %957 = vmatpush1.msra.mxu0 %v843
        %958 = vmatprep.subr.mxu0 0.0
        %959 = vmatpush1.msra.mxu0 %v846
        %960 = vmatprep.subr.mxu0 0.0
        %961 = vmatpush1.msra.mxu0 %v849
        %962 = vmatprep.subr.mxu0 0.0
        %963 = vmatpush1.msra.mxu0 %v852
        %964 = vmatprep.subr.mxu0 0.0
        %965 = vmatpush1.msra.mxu0 %v855
        %966 = vmatprep.subr.mxu0 0.0
        %967 = vmatpush1.msra.mxu0 %v858
        %968 = vmatprep.subr.mxu0 0.0
        %969 = vmatpush1.msra.mxu0 %v861
        %970 = vmatprep.subr.mxu0 0.0
        %971 = vmatpush1.msra.mxu0 %v864
        %972 = vmatprep.subr.mxu0 0.0
        %973 = vmatpush1.msra.mxu0 %v867
        %974 = vmatprep.subr.mxu0 0.0
        %975 = vmatpush1.msra.mxu0 %v870
        %976 = vmatprep.subr.mxu0 0.0
        %977 = vmatpush1.msra.mxu0 %v873
        %978 = vmatprep.subr.mxu0 0.0
        %979 = vmatpush1.msra.mxu0 %v876
        %980 = vmatprep.subr.mxu0 0.0
        %981 = vmatpush1.msra.mxu0 0.0
        %982 = vmatprep.subr.mxu0 0.0
        %983 = vmatpush1.msra.mxu0 0.0
        %984 = vmatprep.subr.mxu0 0.0
        %985 = vmatpush1.msra.mxu0 0.0
        %986 = vmatprep.subr.mxu0 0.0
        %987 = vmatpush1.msra.mxu0 0.0
        %988 = vmatprep.subr.mxu0 0.0
        %989 = vmatpush1.msra.mxu0 0.0
        %990 = vmatprep.subr.mxu0 0.0
        %991 = vmatpush1.msra.mxu0 0.0
        %992 = vmatprep.subr.mxu0 0.0
        %993 = vmatpush1.msra.mxu0 0.0
        %994 = vmatprep.subr.mxu0 0.0
        %995 = vmatpush1.msra.mxu0 0.0
        %996 = vmatprep.subr.mxu0 0.0
        %997 = vmatpush1.msra.mxu0 0.0
        %998 = vmatprep.subr.mxu0 0.0
        %999 = vmatpush1.msra.mxu0 0.0
        %1000 = vmatprep.subr.mxu0 0.0
        %1001 = vmatpush1.msra.mxu0 0.0
        %1002 = vmatprep.subr.mxu0 0.0
        %1003 = vmatpush1.msra.mxu0 0.0
        %1004 = vmatprep.subr.mxu0 0.0
        %1005 = vmatpush1.msra.mxu0 0.0
        %1006 = vmatprep.subr.mxu0 0.0
        %1007 = vmatpush1.msra.mxu0 0.0
        %1008 = vmatprep.subr.mxu0 0.0
        %1009 = vmatpush1.msra.mxu0 0.0
        %1010 = vmatprep.subr.mxu0 0.0
        %1011 = vmatpush1.msra.mxu0 0.0
        %1012 = vmatprep.mubr.f32.mxu0 0.0
        %1013 = vmatmul.mubr.f32.gmra.mrb[0].mxu0 %v822
        %v1014 = vpop.f32.mrb[0].mxu0
        %v1015 = vadd.f32 0.0, %v1014
        %v1016 = vpop.f32.mrb[0].mxu0
        %1017 = vdwg.mxu0
        %v1018 = vadd.f32 %v826, %v944
        %v1019 = vadd.f32 %v827, %v946
        %v1020 = vxor.u32 %v1018, 2147483648
        %v1021 = vxor.u32 %v1019, 2147483648
        %v1022 = vmul.f32 %v1020, 1.442695
        %v1023 = vpow.pop %v1022
        %v1024 = vmul.f32 %v1021, 1.442695
        %v1025 = vpow.pop %v1024
        %v1026 = vadd.f32 %v1023, 1.0
        %v1027 = vadd.f32 %v1025, 1.0
        %v1028 = vrcp.pop %v1026
        %v1029 = vmul.f32 1.0, %v1028
        %v1030 = vrcp.pop %v1027
        %v1031 = vmul.f32 1.0, %v1030
        %v1032 = vadd.f32 %v1015, %v597
        %v1033 = vmul.f32 %v1029, %v1032
        %v1034 = vadd.f32 %v828, %v1033
        %v1035 = vtanh.pop %v1034
        %v1036 = vsub.f32 %v822, %v1035
        %v1037 = vmul.f32 %v1031, %v1036
        %v1038 = vadd.f32 %v1035, %v1037
        %s1039 = scalar_lea.vmem [#allocation3], 8
        %1040 = vst [vmem:[%s1039] sm:$0xff] %v1038
        %s1041 = sadd.s32 %s817, 1
        %p1042 = scmp.lt.s32.totalorder %s1041, 10
        %s1043 = scalar_select %p1042, 1, 0
        %v1044 = vstv %s1043
        %vm1045 = vcmp.eq.s32.totalorder %v1044, 1
        %v1046 = vsel %vm1045, %v1038, %v822
        %s1047 = smul.u32 2, 3
        %s1048 = smul.addr %s1047, 8
        %s1049 = scalar_lea.vmem [#allocation2], %s1048
        %v1050 = vld [vmem:[%s1049] sm:$0xff]
        %v1051 = vld [vmem:[%s1049 + $0x8] sm:$0xff]
        %v1052 = vld [vmem:[%s1049 + $0x10] sm:$0xff]
        %v1053 = vld [vmem:[#allocation4] sm:$0xff]
        %v1054 = vld [vmem:[#allocation4 + $0x8] sm:$0xff]
        %v1055 = vld [vmem:[#allocation4 + $0x10] sm:$0xff]
        %v1056 = vld [vmem:[#allocation4 + $0x18] sm:$0xff]
        %v1057 = vld [vmem:[#allocation4 + $0x20] sm:$0xff]
        %v1058 = vld [vmem:[#allocation4 + $0x28] sm:$0xff]
        %v1059 = vld [vmem:[#allocation4 + $0x30] sm:$0xff]
        %v1060 = vld [vmem:[#allocation4 + $0x38] sm:$0xff]
        %v1061 = vld [vmem:[#allocation4 + $0x40] sm:$0xff]
        %v1062 = vld [vmem:[#allocation4 + $0x48] sm:$0xff]
        %v1063 = vld [vmem:[#allocation4 + $0x50] sm:$0xff]
        %v1064 = vld [vmem:[#allocation4 + $0x58] sm:$0xff]
        %v1065 = vld [vmem:[#allocation4 + $0x60] sm:$0xff]
        %v1066 = vld [vmem:[#allocation4 + $0x68] sm:$0xff]
        %v1067 = vld [vmem:[#allocation4 + $0x70] sm:$0xff]
        %v1068 = vld [vmem:[#allocation4 + $0x78] sm:$0xff]
        %v1069 = vld [vmem:[#allocation4 + $0x80] sm:$0xff]
        %v1070 = vld [vmem:[#allocation4 + $0x88] sm:$0xff]
        %v1071 = vld [vmem:[#allocation4 + $0x90] sm:$0xff]
        %v1072 = vld [vmem:[#allocation4 + $0x98] sm:$0xff]
        %v1073 = vld [vmem:[#allocation4 + $0xa0] sm:$0xff]
        %v1074 = vld [vmem:[#allocation4 + $0xa8] sm:$0xff]
        %v1075 = vld [vmem:[#allocation4 + $0xb0] sm:$0xff]
        %v1076 = vld [vmem:[#allocation4 + $0xb8] sm:$0xff]
        %v1077 = vld [vmem:[#allocation4 + $0xc0] sm:$0xff]
        %v1078 = vld [vmem:[#allocation4 + $0xc8] sm:$0xff]
        %v1079 = vld [vmem:[#allocation4 + $0xd0] sm:$0xff]
        %v1080 = vld [vmem:[#allocation4 + $0xd8] sm:$0xff]
        %v1081 = vld [vmem:[#allocation4 + $0xe0] sm:$0xff]
        %v1082 = vld [vmem:[#allocation4 + $0xe8] sm:$0xff]
        %v1083 = vld [vmem:[#allocation4 + $0xf0] sm:$0xff]
        %v1084 = vld [vmem:[#allocation4 + $0xf8] sm:$0xff]
        %v1085 = vld [vmem:[#allocation4 + $0x100] sm:$0xff]
        %v1086 = vld [vmem:[#allocation4 + $0x108] sm:$0xff]
        %v1087 = vld [vmem:[#allocation4 + $0x110] sm:$0xff]
        %v1088 = vld [vmem:[#allocation4 + $0x118] sm:$0xff]
        %v1089 = vld [vmem:[#allocation4 + $0x120] sm:$0xff]
        %v1090 = vld [vmem:[#allocation4 + $0x128] sm:$0xff]
        %v1091 = vld [vmem:[#allocation4 + $0x130] sm:$0xff]
        %v1092 = vld [vmem:[#allocation4 + $0x138] sm:$0xff]
        %v1093 = vld [vmem:[#allocation4 + $0x140] sm:$0xff]
        %v1094 = vld [vmem:[#allocation4 + $0x148] sm:$0xff]
        %v1095 = vld [vmem:[#allocation4 + $0x150] sm:$0xff]
        %v1096 = vld [vmem:[#allocation4 + $0x158] sm:$0xff]
        %v1097 = vld [vmem:[#allocation4 + $0x160] sm:$0xff]
        %v1098 = vld [vmem:[#allocation4 + $0x168] sm:$0xff]
        %v1099 = vld [vmem:[#allocation4 + $0x170] sm:$0xff]
        %v1100 = vld [vmem:[#allocation4 + $0x178] sm:$0xff]
        %1101 = vmatprep.subr.mxu0 %v1054
        %1102 = vmatpush1.msra.mxu0 %v1053
        %1103 = vmatprep.subr.mxu0 %v1057
        %1104 = vmatpush1.msra.mxu0 %v1056
        %1105 = vmatprep.subr.mxu0 %v1060
        %1106 = vmatpush1.msra.mxu0 %v1059
        %1107 = vmatprep.subr.mxu0 %v1063
        %1108 = vmatpush1.msra.mxu0 %v1062
        %1109 = vmatprep.subr.mxu0 %v1066
        %1110 = vmatpush1.msra.mxu0 %v1065
        %1111 = vmatprep.subr.mxu0 %v1069
        %1112 = vmatpush1.msra.mxu0 %v1068
        %1113 = vmatprep.subr.mxu0 %v1072
        %1114 = vmatpush1.msra.mxu0 %v1071
        %1115 = vmatprep.subr.mxu0 %v1075
        %1116 = vmatpush1.msra.mxu0 %v1074
        %1117 = vmatprep.subr.mxu0 %v1078
        %1118 = vmatpush1.msra.mxu0 %v1077
        %1119 = vmatprep.subr.mxu0 %v1081
        %1120 = vmatpush1.msra.mxu0 %v1080
        %1121 = vmatprep.subr.mxu0 %v1084
        %1122 = vmatpush1.msra.mxu0 %v1083
        %1123 = vmatprep.subr.mxu0 %v1087
        %1124 = vmatpush1.msra.mxu0 %v1086
        %1125 = vmatprep.subr.mxu0 %v1090
        %1126 = vmatpush1.msra.mxu0 %v1089
        %1127 = vmatprep.subr.mxu0 %v1093
        %1128 = vmatpush1.msra.mxu0 %v1092
        %1129 = vmatprep.subr.mxu0 %v1096
        %1130 = vmatpush1.msra.mxu0 %v1095
        %1131 = vmatprep.subr.mxu0 %v1099
        %1132 = vmatpush1.msra.mxu0 %v1098
        %1133 = vmatprep.subr.mxu0 0.0
        %1134 = vmatpush1.msra.mxu0 0.0
        %1135 = vmatprep.subr.mxu0 0.0
        %1136 = vmatpush1.msra.mxu0 0.0
        %1137 = vmatprep.subr.mxu0 0.0
        %1138 = vmatpush1.msra.mxu0 0.0
        %1139 = vmatprep.subr.mxu0 0.0
        %1140 = vmatpush1.msra.mxu0 0.0
        %1141 = vmatprep.subr.mxu0 0.0
        %1142 = vmatpush1.msra.mxu0 0.0
        %1143 = vmatprep.subr.mxu0 0.0
        %1144 = vmatpush1.msra.mxu0 0.0
        %1145 = vmatprep.subr.mxu0 0.0
        %1146 = vmatpush1.msra.mxu0 0.0
        %1147 = vmatprep.subr.mxu0 0.0
        %1148 = vmatpush1.msra.mxu0 0.0
        %1149 = vmatprep.subr.mxu0 0.0
        %1150 = vmatpush1.msra.mxu0 0.0
        %1151 = vmatprep.subr.mxu0 0.0
        %1152 = vmatpush1.msra.mxu0 0.0
        %1153 = vmatprep.subr.mxu0 0.0
        %1154 = vmatpush1.msra.mxu0 0.0
        %1155 = vmatprep.subr.mxu0 0.0
        %1156 = vmatpush1.msra.mxu0 0.0
        %1157 = vmatprep.subr.mxu0 0.0
        %1158 = vmatpush1.msra.mxu0 0.0
        %1159 = vmatprep.subr.mxu0 0.0
        %1160 = vmatpush1.msra.mxu0 0.0
        %1161 = vmatprep.subr.mxu0 0.0
        %1162 = vmatpush1.msra.mxu0 0.0
        %1163 = vmatprep.subr.mxu0 0.0
        %1164 = vmatpush1.msra.mxu0 0.0
        %1165 = vmatprep.mubr.f32.mxu0 0.0
        %1166 = vmatmul.mubr.f32.gmra.mrb[0].mxu0 %v1046
        %v1167 = vpop.f32.mrb[0].mxu0
        %v1168 = vadd.f32 0.0, %v1167
        %v1169 = vpop.f32.mrb[0].mxu0
        %v1170 = vadd.f32 0.0, %v1169
        %1171 = vdwg.mxu0
        %1172 = vmatprep.subr.mxu0 0.0
        %1173 = vmatpush1.msra.mxu0 %v1055
        %1174 = vmatprep.subr.mxu0 0.0
        %1175 = vmatpush1.msra.mxu0 %v1058
        %1176 = vmatprep.subr.mxu0 0.0
        %1177 = vmatpush1.msra.mxu0 %v1061
        %1178 = vmatprep.subr.mxu0 0.0
        %1179 = vmatpush1.msra.mxu0 %v1064
        %1180 = vmatprep.subr.mxu0 0.0
        %1181 = vmatpush1.msra.mxu0 %v1067
        %1182 = vmatprep.subr.mxu0 0.0
        %1183 = vmatpush1.msra.mxu0 %v1070
        %1184 = vmatprep.subr.mxu0 0.0
        %1185 = vmatpush1.msra.mxu0 %v1073
        %1186 = vmatprep.subr.mxu0 0.0
        %1187 = vmatpush1.msra.mxu0 %v1076
        %1188 = vmatprep.subr.mxu0 0.0
        %1189 = vmatpush1.msra.mxu0 %v1079
        %1190 = vmatprep.subr.mxu0 0.0
        %1191 = vmatpush1.msra.mxu0 %v1082
        %1192 = vmatprep.subr.mxu0 0.0
        %1193 = vmatpush1.msra.mxu0 %v1085
        %1194 = vmatprep.subr.mxu0 0.0
        %1195 = vmatpush1.msra.mxu0 %v1088
        %1196 = vmatprep.subr.mxu0 0.0
        %1197 = vmatpush1.msra.mxu0 %v1091
        %1198 = vmatprep.subr.mxu0 0.0
        %1199 = vmatpush1.msra.mxu0 %v1094
        %1200 = vmatprep.subr.mxu0 0.0
        %1201 = vmatpush1.msra.mxu0 %v1097
        %1202 = vmatprep.subr.mxu0 0.0
        %1203 = vmatpush1.msra.mxu0 %v1100
        %1204 = vmatprep.subr.mxu0 0.0
        %1205 = vmatpush1.msra.mxu0 0.0
        %1206 = vmatprep.subr.mxu0 0.0
        %1207 = vmatpush1.msra.mxu0 0.0
        %1208 = vmatprep.subr.mxu0 0.0
        %1209 = vmatpush1.msra.mxu0 0.0
        %1210 = vmatprep.subr.mxu0 0.0
        %1211 = vmatpush1.msra.mxu0 0.0
        %1212 = vmatprep.subr.mxu0 0.0
        %1213 = vmatpush1.msra.mxu0 0.0
        %1214 = vmatprep.subr.mxu0 0.0
        %1215 = vmatpush1.msra.mxu0 0.0
        %1216 = vmatprep.subr.mxu0 0.0
        %1217 = vmatpush1.msra.mxu0 0.0
        %1218 = vmatprep.subr.mxu0 0.0
        %1219 = vmatpush1.msra.mxu0 0.0
        %1220 = vmatprep.subr.mxu0 0.0
        %1221 = vmatpush1.msra.mxu0 0.0
        %1222 = vmatprep.subr.mxu0 0.0
        %1223 = vmatpush1.msra.mxu0 0.0
        %1224 = vmatprep.subr.mxu0 0.0
        %1225 = vmatpush1.msra.mxu0 0.0
        %1226 = vmatprep.subr.mxu0 0.0
        %1227 = vmatpush1.msra.mxu0 0.0
        %1228 = vmatprep.subr.mxu0 0.0
        %1229 = vmatpush1.msra.mxu0 0.0
        %1230 = vmatprep.subr.mxu0 0.0
        %1231 = vmatpush1.msra.mxu0 0.0
        %1232 = vmatprep.subr.mxu0 0.0
        %1233 = vmatpush1.msra.mxu0 0.0
        %1234 = vmatprep.subr.mxu0 0.0
        %1235 = vmatpush1.msra.mxu0 0.0
        %1236 = vmatprep.mubr.f32.mxu0 0.0
        %1237 = vmatmul.mubr.f32.gmra.mrb[0].mxu0 %v1046
        %v1238 = vpop.f32.mrb[0].mxu0
        %v1239 = vadd.f32 0.0, %v1238
        %v1240 = vpop.f32.mrb[0].mxu0
        %1241 = vdwg.mxu0
        %v1242 = vadd.f32 %v1050, %v1168
        %v1243 = vadd.f32 %v1051, %v1170
        %v1244 = vxor.u32 %v1242, 2147483648
        %v1245 = vxor.u32 %v1243, 2147483648
        %v1246 = vmul.f32 %v1244, 1.442695
        %v1247 = vpow.pop %v1246
        %v1248 = vmul.f32 %v1245, 1.442695
        %v1249 = vpow.pop %v1248
        %v1250 = vadd.f32 %v1247, 1.0
        %v1251 = vadd.f32 %v1249, 1.0
        %v1252 = vrcp.pop %v1250
        %v1253 = vmul.f32 1.0, %v1252
        %v1254 = vrcp.pop %v1251
        %v1255 = vmul.f32 1.0, %v1254
        %v1256 = vadd.f32 %v1239, %v597
        %v1257 = vmul.f32 %v1253, %v1256
        %v1258 = vadd.f32 %v1052, %v1257
        %v1259 = vtanh.pop %v1258
        %v1260 = vsub.f32 %v1046, %v1259
        %v1261 = vmul.f32 %v1255, %v1260
        %v1262 = vadd.f32 %v1259, %v1261
        %s1263 = scalar_lea.vmem [#allocation3], 16
        %1264 = vst [vmem:[%s1263] sm:$0xff] %v1262
        %s1265 = sadd.s32 %s817, 2
        %p1266 = scmp.lt.s32.totalorder %s1265, 10
        %s1267 = scalar_select %p1266, 1, 0
        %v1268 = vstv %s1267
        %vm1269 = vcmp.eq.s32.totalorder %v1268, 1
        %v1270 = vsel %vm1269, %v1262, %v1046
        %s1271 = smul.u32 3, 3
        %s1272 = smul.addr %s1271, 8
        %s1273 = scalar_lea.vmem [#allocation2], %s1272
        %v1274 = vld [vmem:[%s1273] sm:$0xff]
        %v1275 = vld [vmem:[%s1273 + $0x8] sm:$0xff]
        %v1276 = vld [vmem:[%s1273 + $0x10] sm:$0xff]
        %v1277 = vld [vmem:[#allocation4] sm:$0xff]
        %v1278 = vld [vmem:[#allocation4 + $0x8] sm:$0xff]
        %v1279 = vld [vmem:[#allocation4 + $0x10] sm:$0xff]
        %v1280 = vld [vmem:[#allocation4 + $0x18] sm:$0xff]
        %v1281 = vld [vmem:[#allocation4 + $0x20] sm:$0xff]
        %v1282 = vld [vmem:[#allocation4 + $0x28] sm:$0xff]
        %v1283 = vld [vmem:[#allocation4 + $0x30] sm:$0xff]
        %v1284 = vld [vmem:[#allocation4 + $0x38] sm:$0xff]
        %v1285 = vld [vmem:[#allocation4 + $0x40] sm:$0xff]
        %v1286 = vld [vmem:[#allocation4 + $0x48] sm:$0xff]
        %v1287 = vld [vmem:[#allocation4 + $0x50] sm:$0xff]
        %v1288 = vld [vmem:[#allocation4 + $0x58] sm:$0xff]
        %v1289 = vld [vmem:[#allocation4 + $0x60] sm:$0xff]
        %v1290 = vld [vmem:[#allocation4 + $0x68] sm:$0xff]
        %v1291 = vld [vmem:[#allocation4 + $0x70] sm:$0xff]
        %v1292 = vld [vmem:[#allocation4 + $0x78] sm:$0xff]
        %v1293 = vld [vmem:[#allocation4 + $0x80] sm:$0xff]
        %v1294 = vld [vmem:[#allocation4 + $0x88] sm:$0xff]
        %v1295 = vld [vmem:[#allocation4 + $0x90] sm:$0xff]
        %v1296 = vld [vmem:[#allocation4 + $0x98] sm:$0xff]
        %v1297 = vld [vmem:[#allocation4 + $0xa0] sm:$0xff]
        %v1298 = vld [vmem:[#allocation4 + $0xa8] sm:$0xff]
        %v1299 = vld [vmem:[#allocation4 + $0xb0] sm:$0xff]
        %v1300 = vld [vmem:[#allocation4 + $0xb8] sm:$0xff]
        %v1301 = vld [vmem:[#allocation4 + $0xc0] sm:$0xff]
        %v1302 = vld [vmem:[#allocation4 + $0xc8] sm:$0xff]
        %v1303 = vld [vmem:[#allocation4 + $0xd0] sm:$0xff]
        %v1304 = vld [vmem:[#allocation4 + $0xd8] sm:$0xff]
        %v1305 = vld [vmem:[#allocation4 + $0xe0] sm:$0xff]
        %v1306 = vld [vmem:[#allocation4 + $0xe8] sm:$0xff]
        %v1307 = vld [vmem:[#allocation4 + $0xf0] sm:$0xff]
        %v1308 = vld [vmem:[#allocation4 + $0xf8] sm:$0xff]
        %v1309 = vld [vmem:[#allocation4 + $0x100] sm:$0xff]
        %v1310 = vld [vmem:[#allocation4 + $0x108] sm:$0xff]
        %v1311 = vld [vmem:[#allocation4 + $0x110] sm:$0xff]
        %v1312 = vld [vmem:[#allocation4 + $0x118] sm:$0xff]
        %v1313 = vld [vmem:[#allocation4 + $0x120] sm:$0xff]
        %v1314 = vld [vmem:[#allocation4 + $0x128] sm:$0xff]
        %v1315 = vld [vmem:[#allocation4 + $0x130] sm:$0xff]
        %v1316 = vld [vmem:[#allocation4 + $0x138] sm:$0xff]
        %v1317 = vld [vmem:[#allocation4 + $0x140] sm:$0xff]
        %v1318 = vld [vmem:[#allocation4 + $0x148] sm:$0xff]
        %v1319 = vld [vmem:[#allocation4 + $0x150] sm:$0xff]
        %v1320 = vld [vmem:[#allocation4 + $0x158] sm:$0xff]
        %v1321 = vld [vmem:[#allocation4 + $0x160] sm:$0xff]
        %v1322 = vld [vmem:[#allocation4 + $0x168] sm:$0xff]
        %v1323 = vld [vmem:[#allocation4 + $0x170] sm:$0xff]
        %v1324 = vld [vmem:[#allocation4 + $0x178] sm:$0xff]
        %1325 = vmatprep.subr.mxu0 %v1278
        %1326 = vmatpush1.msra.mxu0 %v1277
        %1327 = vmatprep.subr.mxu0 %v1281
        %1328 = vmatpush1.msra.mxu0 %v1280
        %1329 = vmatprep.subr.mxu0 %v1284
        %1330 = vmatpush1.msra.mxu0 %v1283
        %1331 = vmatprep.subr.mxu0 %v1287
        %1332 = vmatpush1.msra.mxu0 %v1286
        %1333 = vmatprep.subr.mxu0 %v1290
        %1334 = vmatpush1.msra.mxu0 %v1289
        %1335 = vmatprep.subr.mxu0 %v1293
        %1336 = vmatpush1.msra.mxu0 %v1292
        %1337 = vmatprep.subr.mxu0 %v1296
        %1338 = vmatpush1.msra.mxu0 %v1295
        %1339 = vmatprep.subr.mxu0 %v1299
        %1340 = vmatpush1.msra.mxu0 %v1298
        %1341 = vmatprep.subr.mxu0 %v1302
        %1342 = vmatpush1.msra.mxu0 %v1301
        %1343 = vmatprep.subr.mxu0 %v1305
        %1344 = vmatpush1.msra.mxu0 %v1304
        %1345 = vmatprep.subr.mxu0 %v1308
        %1346 = vmatpush1.msra.mxu0 %v1307
        %1347 = vmatprep.subr.mxu0 %v1311
        %1348 = vmatpush1.msra.mxu0 %v1310
        %1349 = vmatprep.subr.mxu0 %v1314
        %1350 = vmatpush1.msra.mxu0 %v1313
        %1351 = vmatprep.subr.mxu0 %v1317
        %1352 = vmatpush1.msra.mxu0 %v1316
        %1353 = vmatprep.subr.mxu0 %v1320
        %1354 = vmatpush1.msra.mxu0 %v1319
        %1355 = vmatprep.subr.mxu0 %v1323
        %1356 = vmatpush1.msra.mxu0 %v1322
        %1357 = vmatprep.subr.mxu0 0.0
        %1358 = vmatpush1.msra.mxu0 0.0
        %1359 = vmatprep.subr.mxu0 0.0
        %1360 = vmatpush1.msra.mxu0 0.0
        %1361 = vmatprep.subr.mxu0 0.0
        %1362 = vmatpush1.msra.mxu0 0.0
        %1363 = vmatprep.subr.mxu0 0.0
        %1364 = vmatpush1.msra.mxu0 0.0
        %1365 = vmatprep.subr.mxu0 0.0
        %1366 = vmatpush1.msra.mxu0 0.0
        %1367 = vmatprep.subr.mxu0 0.0
        %1368 = vmatpush1.msra.mxu0 0.0
        %1369 = vmatprep.subr.mxu0 0.0
        %1370 = vmatpush1.msra.mxu0 0.0
        %1371 = vmatprep.subr.mxu0 0.0
        %1372 = vmatpush1.msra.mxu0 0.0
        %1373 = vmatprep.subr.mxu0 0.0
        %1374 = vmatpush1.msra.mxu0 0.0
        %1375 = vmatprep.subr.mxu0 0.0
        %1376 = vmatpush1.msra.mxu0 0.0
        %1377 = vmatprep.subr.mxu0 0.0
        %1378 = vmatpush1.msra.mxu0 0.0
        %1379 = vmatprep.subr.mxu0 0.0
        %1380 = vmatpush1.msra.mxu0 0.0
        %1381 = vmatprep.subr.mxu0 0.0
        %1382 = vmatpush1.msra.mxu0 0.0
        %1383 = vmatprep.subr.mxu0 0.0
        %1384 = vmatpush1.msra.mxu0 0.0
        %1385 = vmatprep.subr.mxu0 0.0
        %1386 = vmatpush1.msra.mxu0 0.0
        %1387 = vmatprep.subr.mxu0 0.0
        %1388 = vmatpush1.msra.mxu0 0.0
        %1389 = vmatprep.mubr.f32.mxu0 0.0
        %1390 = vmatmul.mubr.f32.gmra.mrb[0].mxu0 %v1270
        %v1391 = vpop.f32.mrb[0].mxu0
        %v1392 = vadd.f32 0.0, %v1391
        %v1393 = vpop.f32.mrb[0].mxu0
        %v1394 = vadd.f32 0.0, %v1393
        %1395 = vdwg.mxu0
        %1396 = vmatprep.subr.mxu0 0.0
        %1397 = vmatpush1.msra.mxu0 %v1279
        %1398 = vmatprep.subr.mxu0 0.0
        %1399 = vmatpush1.msra.mxu0 %v1282
        %1400 = vmatprep.subr.mxu0 0.0
        %1401 = vmatpush1.msra.mxu0 %v1285
        %1402 = vmatprep.subr.mxu0 0.0
        %1403 = vmatpush1.msra.mxu0 %v1288
        %1404 = vmatprep.subr.mxu0 0.0
        %1405 = vmatpush1.msra.mxu0 %v1291
        %1406 = vmatprep.subr.mxu0 0.0
        %1407 = vmatpush1.msra.mxu0 %v1294
        %1408 = vmatprep.subr.mxu0 0.0
        %1409 = vmatpush1.msra.mxu0 %v1297
        %1410 = vmatprep.subr.mxu0 0.0
        %1411 = vmatpush1.msra.mxu0 %v1300
        %1412 = vmatprep.subr.mxu0 0.0
        %1413 = vmatpush1.msra.mxu0 %v1303
        %1414 = vmatprep.subr.mxu0 0.0
        %1415 = vmatpush1.msra.mxu0 %v1306
        %1416 = vmatprep.subr.mxu0 0.0
        %1417 = vmatpush1.msra.mxu0 %v1309
        %1418 = vmatprep.subr.mxu0 0.0
        %1419 = vmatpush1.msra.mxu0 %v1312
        %1420 = vmatprep.subr.mxu0 0.0
        %1421 = vmatpush1.msra.mxu0 %v1315
        %1422 = vmatprep.subr.mxu0 0.0
        %1423 = vmatpush1.msra.mxu0 %v1318
        %1424 = vmatprep.subr.mxu0 0.0
        %1425 = vmatpush1.msra.mxu0 %v1321
        %1426 = vmatprep.subr.mxu0 0.0
        %1427 = vmatpush1.msra.mxu0 %v1324
        %1428 = vmatprep.subr.mxu0 0.0
        %1429 = vmatpush1.msra.mxu0 0.0
        %1430 = vmatprep.subr.mxu0 0.0
        %1431 = vmatpush1.msra.mxu0 0.0
        %1432 = vmatprep.subr.mxu0 0.0
        %1433 = vmatpush1.msra.mxu0 0.0
        %1434 = vmatprep.subr.mxu0 0.0
        %1435 = vmatpush1.msra.mxu0 0.0
        %1436 = vmatprep.subr.mxu0 0.0
        %1437 = vmatpush1.msra.mxu0 0.0
        %1438 = vmatprep.subr.mxu0 0.0
        %1439 = vmatpush1.msra.mxu0 0.0
        %1440 = vmatprep.subr.mxu0 0.0
        %1441 = vmatpush1.msra.mxu0 0.0
        %1442 = vmatprep.subr.mxu0 0.0
        %1443 = vmatpush1.msra.mxu0 0.0
        %1444 = vmatprep.subr.mxu0 0.0
        %1445 = vmatpush1.msra.mxu0 0.0
        %1446 = vmatprep.subr.mxu0 0.0
        %1447 = vmatpush1.msra.mxu0 0.0
        %1448 = vmatprep.subr.mxu0 0.0
        %1449 = vmatpush1.msra.mxu0 0.0
        %1450 = vmatprep.subr.mxu0 0.0
        %1451 = vmatpush1.msra.mxu0 0.0
        %1452 = vmatprep.subr.mxu0 0.0
        %1453 = vmatpush1.msra.mxu0 0.0
        %1454 = vmatprep.subr.mxu0 0.0
        %1455 = vmatpush1.msra.mxu0 0.0
        %1456 = vmatprep.subr.mxu0 0.0
        %1457 = vmatpush1.msra.mxu0 0.0
        %1458 = vmatprep.subr.mxu0 0.0
        %1459 = vmatpush1.msra.mxu0 0.0
        %1460 = vmatprep.mubr.f32.mxu0 0.0
        %1461 = vmatmul.mubr.f32.gmra.mrb[0].mxu0 %v1270
        %v1462 = vpop.f32.mrb[0].mxu0
        %v1463 = vadd.f32 0.0, %v1462
        %v1464 = vpop.f32.mrb[0].mxu0
        %1465 = vdwg.mxu0
        %v1466 = vadd.f32 %v1274, %v1392
        %v1467 = vadd.f32 %v1275, %v1394
        %v1468 = vxor.u32 %v1466, 2147483648
        %v1469 = vxor.u32 %v1467, 2147483648
        %v1470 = vmul.f32 %v1468, 1.442695
        %v1471 = vpow.pop %v1470
        %v1472 = vmul.f32 %v1469, 1.442695
        %v1473 = vpow.pop %v1472
        %v1474 = vadd.f32 %v1471, 1.0
        %v1475 = vadd.f32 %v1473, 1.0
        %v1476 = vrcp.pop %v1474
        %v1477 = vmul.f32 1.0, %v1476
        %v1478 = vrcp.pop %v1475
        %v1479 = vmul.f32 1.0, %v1478
        %v1480 = vadd.f32 %v1463, %v597
        %v1481 = vmul.f32 %v1477, %v1480
        %v1482 = vadd.f32 %v1276, %v1481
        %v1483 = vtanh.pop %v1482
        %v1484 = vsub.f32 %v1270, %v1483
        %v1485 = vmul.f32 %v1479, %v1484
        %v1486 = vadd.f32 %v1483, %v1485
        %s1487 = scalar_lea.vmem [#allocation3], 24
        %1488 = vst [vmem:[%s1487] sm:$0xff] %v1486
        %s1489 = sadd.s32 %s817, 3
        %p1490 = scmp.lt.s32.totalorder %s1489, 10
        %s1491 = scalar_select %p1490, 1, 0
        %v1492 = vstv %s1491
        %vm1493 = vcmp.eq.s32.totalorder %v1492, 1
        %v1494 = vsel %vm1493, %v1486, %v1270
        %1495 = vst [vmem:[%s349] sm:$0xff] %v1494
        %v1496 = vld [vmem:[#allocation3] sm:$0xff]
        %v1497 = vld [vmem:[#allocation3 + $0x8] sm:$0xff]
        %v1498 = vld [vmem:[#allocation3 + $0x10] sm:$0xff]
        %v1499 = vld [vmem:[#allocation3 + $0x18] sm:$0xff]
        %v1500 = vld [vmem:[%s5] sm:$0xff]
        %v1501 = vld [vmem:[%s5 + $0x8] sm:$0xff]
        %v1502 = vld [vmem:[%s5 + $0x10] sm:$0xff]
        %v1503 = vld [vmem:[%s5 + $0x18] sm:$0xff]
        %v1504 = vld [vmem:[%s5 + $0x20] sm:$0xff]
        %v1505 = vld [vmem:[%s5 + $0x28] sm:$0xff]
        %v1506 = vld [vmem:[%s5 + $0x30] sm:$0xff]
        %v1507 = vld [vmem:[%s5 + $0x38] sm:$0xff]
        %v1508 = vld [vmem:[%s5 + $0x40] sm:$0xff]
        %v1509 = vld [vmem:[%s5 + $0x48] sm:$0xff]
        %v1510 = vld [vmem:[%s5 + $0x50] sm:$0xff]
        %v1511 = vld [vmem:[%s5 + $0x58] sm:$0xff]
        %v1512 = vld [vmem:[%s5 + $0x60] sm:$0xff]
        %v1513 = vld [vmem:[%s5 + $0x68] sm:$0xff]
        %v1514 = vld [vmem:[%s5 + $0x70] sm:$0xff]
        %v1515 = vld [vmem:[%s5 + $0x78] sm:$0xff]
        %v1516 = vld [vmem:[%s6] sm:$0x1]
        %v1518 = vlaneseq
        %v1519 = vshrl.u32 %v1518, 7
        %v1520 = vsub.s32 0, %v1519
        %v1521 = vrot.slane %v1516, %v1520
        %1523 = vmatprep.subr.mxu0 0.0
        %1524 = vmatpush1.msra.mxu0 %v1500
        %1525 = vmatprep.subr.mxu0 0.0
        %1526 = vmatpush1.msra.mxu0 %v1501
        %1527 = vmatprep.subr.mxu0 0.0
        %1528 = vmatpush1.msra.mxu0 %v1502
        %1529 = vmatprep.subr.mxu0 0.0
        %1530 = vmatpush1.msra.mxu0 %v1503
        %1531 = vmatprep.subr.mxu0 0.0
        %1532 = vmatpush1.msra.mxu0 %v1504
        %1533 = vmatprep.subr.mxu0 0.0
        %1534 = vmatpush1.msra.mxu0 %v1505
        %1535 = vmatprep.subr.mxu0 0.0
        %1536 = vmatpush1.msra.mxu0 %v1506
        %1537 = vmatprep.subr.mxu0 0.0
        %1538 = vmatpush1.msra.mxu0 %v1507
        %1539 = vmatprep.subr.mxu0 0.0
        %1540 = vmatpush1.msra.mxu0 %v1508
        %1541 = vmatprep.subr.mxu0 0.0
        %1542 = vmatpush1.msra.mxu0 %v1509
        %1543 = vmatprep.subr.mxu0 0.0
        %1544 = vmatpush1.msra.mxu0 %v1510
        %1545 = vmatprep.subr.mxu0 0.0
        %1546 = vmatpush1.msra.mxu0 %v1511
        %1547 = vmatprep.subr.mxu0 0.0
        %1548 = vmatpush1.msra.mxu0 %v1512
        %1549 = vmatprep.subr.mxu0 0.0
        %1550 = vmatpush1.msra.mxu0 %v1513
        %1551 = vmatprep.subr.mxu0 0.0
        %1552 = vmatpush1.msra.mxu0 %v1514
        %1553 = vmatprep.subr.mxu0 0.0
        %1554 = vmatpush1.msra.mxu0 %v1515
        %1555 = vmatprep.subr.mxu0 0.0
        %1556 = vmatpush1.msra.mxu0 0.0
        %1557 = vmatprep.subr.mxu0 0.0
        %1558 = vmatpush1.msra.mxu0 0.0
        %1559 = vmatprep.subr.mxu0 0.0
        %1560 = vmatpush1.msra.mxu0 0.0
        %1561 = vmatprep.subr.mxu0 0.0
        %1562 = vmatpush1.msra.mxu0 0.0
        %1563 = vmatprep.subr.mxu0 0.0
        %1564 = vmatpush1.msra.mxu0 0.0
        %1565 = vmatprep.subr.mxu0 0.0
        %1566 = vmatpush1.msra.mxu0 0.0
        %1567 = vmatprep.subr.mxu0 0.0
        %1568 = vmatpush1.msra.mxu0 0.0
        %1569 = vmatprep.subr.mxu0 0.0
        %1570 = vmatpush1.msra.mxu0 0.0
        %1571 = vmatprep.subr.mxu0 0.0
        %1572 = vmatpush1.msra.mxu0 0.0
        %1573 = vmatprep.subr.mxu0 0.0
        %1574 = vmatpush1.msra.mxu0 0.0
        %1575 = vmatprep.subr.mxu0 0.0
        %1576 = vmatpush1.msra.mxu0 0.0
        %1577 = vmatprep.subr.mxu0 0.0
        %1578 = vmatpush1.msra.mxu0 0.0
        %1579 = vmatprep.subr.mxu0 0.0
        %1580 = vmatpush1.msra.mxu0 0.0
        %1581 = vmatprep.subr.mxu0 0.0
        %1582 = vmatpush1.msra.mxu0 0.0
        %1583 = vmatprep.subr.mxu0 0.0
        %1584 = vmatpush1.msra.mxu0 0.0
        %1585 = vmatprep.subr.mxu0 0.0
        %1586 = vmatpush1.msra.mxu0 0.0
        %1587 = vmatprep.mubr.f32.mxu0 0.0
        %1588 = vmatmul.mubr.f32.gmra.mrb[0].mxu0 %v1496
        %v1589 = vpop.f32.mrb[0].mxu0
        %v1590 = vadd.f32 %v1521, %v1589
        %v1591 = vpop.f32.mrb[0].mxu0
        %1592 = vmatprep.mubr.f32.mxu0 0.0
        %1593 = vmatmul.mubr.f32.gmra.mrb[0].mxu0 %v1497
        %v1594 = vpop.f32.mrb[0].mxu0
        %v1595 = vadd.f32 %v1521, %v1594
        %v1596 = vpop.f32.mrb[0].mxu0
        %1597 = vmatprep.mubr.f32.mxu0 0.0
        %1598 = vmatmul.mubr.f32.gmra.mrb[0].mxu0 %v1498
        %v1599 = vpop.f32.mrb[0].mxu0
        %v1600 = vadd.f32 %v1521, %v1599
        %v1601 = vpop.f32.mrb[0].mxu0
        %1602 = vmatprep.mubr.f32.mxu0 0.0
        %1603 = vmatmul.mubr.f32.gmra.mrb[0].mxu0 %v1499
        %v1604 = vpop.f32.mrb[0].mxu0
        %v1605 = vadd.f32 %v1521, %v1604
        %v1606 = vpop.f32.mrb[0].mxu0
        %1607 = vdwg.mxu0
        %1608 = vst [vmem:[%s342] sm:$0xff] %v1590
        %1609 = vst [vmem:[%s342 + $0x8] sm:$0xff] %v1595
        %1610 = vst [vmem:[%s342 + $0x10] sm:$0xff] %v1600
        %1611 = vst [vmem:[%s342 + $0x18] sm:$0xff] %v1605
        %s1612 = sand.u32 %s203, 1
        %s1613 = scalar_lea.sflag [#allocation6], %s1612
        %s1614 = sand.u32 %s203, 1
        %s1615 = smul.addr %s1614, 32
        %s1616 = scalar_lea.vmem [#allocation7], %s1615
        %s1617 = sand.u32 %s229, 1
        %s1618 = scalar_lea.sflag [#allocation9], %s1617
        %s1619 = sand.u32 %s229, 1
        %s1620 = smul.addr %s1619, 8
        %s1621 = scalar_lea.vmem [#allocation8], %s1620
        // Predicated region
        $region57: #{tpu_custom_call.1} parent=47 // pred_check
          %p1622 = pneg %p213
        $region58: #{tpu_custom_call.1} parent=47 // pred_check_branch
          %1624 = sbr.rel (%p1622) target = $region60
        $region59: #{tpu_custom_call.1} parent=47 // pred_region
          %s1625 = smul.u32 4, %s32
          %s1627 = ssub.s32 512, 512
          %1628 = vsyncadd %s1613, %s1627
          %s1629 = smul.addr %s31, 12
          %s1630 = sadd.s32 %s1625, %s1629
          %s1631 = smul.addr %s1630, 128
          %s1632 = scalar_lea.hbm %s7, %s1631
          %s1633 = sshll.u32 %s1616, 4
          %s1634 = int_to_ptr.vmem [resolvable:$true] %s1633
          %1639 = dma.vmem_to_hbm [thread:$0]  %s1634, 512, %s1632, %s1613, 128, 128, 8
        $region60: #{tpu_custom_call.1} parent=47 // pred_fallthru
          _
        // Predicated region
        $region61: #{tpu_custom_call.1} parent=47 // pred_check
          %p1640 = pneg %p239
        $region62: #{tpu_custom_call.1} parent=47 // pred_check_branch
          %1642 = sbr.rel (%p1640) target = $region64
        $region63: #{tpu_custom_call.1} parent=47 // pred_region
          %s1644 = ssub.s32 128, 128
          %1645 = vsyncadd %s1618, %s1644
          %s1646 = smul.addr %s31, 128
          %s1647 = scalar_lea.hbm %s8, %s1646
          %s1649 = sshll.u32 %s1621, 4
          %s1650 = int_to_ptr.vmem [resolvable:$true] %s1649
          %1652 = dma.vmem_to_hbm [thread:$0]  %s1650, 128, %s1647, %s1618
        $region64: #{tpu_custom_call.1} parent=47 // pred_fallthru
          _
      $region48: #{tpu_custom_call.1} parent=5 // pred_fallthru
        _
      %p1653 = scmp.le.s32.totalorder 2, %s22
      // Predicated region
      $region65: #{tpu_custom_call.1} parent=5 // pred_check
        %p1654 = pneg %p1653
      $region66: #{tpu_custom_call.1} parent=5 // pred_check_branch
        %1656 = sbr.rel (%p1654) target = $region68
      $region67: #{tpu_custom_call.1} parent=5 // pred_region
        %s1657 = ssub.s32 %s22, 2
        // Predicated region
        $region69: #{tpu_custom_call.1} parent=67 // pred_check
          %p1658 = pneg %p219
        $region70: #{tpu_custom_call.1} parent=67 // pred_check_branch
          %1660 = sbr.rel (%p1658) target = $region72
        $region71: #{tpu_custom_call.1} parent=67 // pred_region
          %s1661 = sand.u32 %s204, 1
          %s1662 = scalar_lea.sflag [#allocation6], %s1661
          %s1663 = sand.u32 %s204, 1
          %s1664 = smul.addr %s1663, 32
          %s1665 = scalar_lea.vmem [#allocation7], %s1664
          %1666 = dma.done %s1662, 512
        $region72: #{tpu_custom_call.1} parent=67 // pred_fallthru
          _
        // Predicated region
        $region73: #{tpu_custom_call.1} parent=67 // pred_check
          %p1667 = pneg %p245
        $region74: #{tpu_custom_call.1} parent=67 // pred_check_branch
          %1669 = sbr.rel (%p1667) target = $region76
        $region75: #{tpu_custom_call.1} parent=67 // pred_region
          %s1670 = sand.u32 %s230, 1
          %s1671 = scalar_lea.sflag [#allocation9], %s1670
          %s1672 = sand.u32 %s230, 1
          %s1673 = smul.addr %s1672, 8
          %s1674 = scalar_lea.vmem [#allocation8], %s1673
          %1675 = dma.done %s1671, 128
        $region76: #{tpu_custom_call.1} parent=67 // pred_fallthru
          _
      $region68: #{tpu_custom_call.1} parent=5 // pred_fallthru
        _
    $region6: #{tpu_custom_call.1} parent=1 // loop_footer
      %s26 = sadd.s32 1, %s22
    $region7: #{tpu_custom_call.1} parent=1 // loop_footer_branch
      %21 = sbr.rel target = $region3
    $region8: #{tpu_custom_call.1} parent=1 // loop_exit
      _
    %1676 = vsyncpa [#allocation5], 1
    %s1677 = scalar_lea.sflag [#allocation5], 1
    %1678 = vsyncpa %s1677, 1
    %1679 = vsyncpa [#allocation6], 1
    %s1680 = scalar_lea.sflag [#allocation6], 1
    %1681 = vsyncpa %s1680, 1
    %1682 = vsyncpa [#allocation9], 1
    %s1683 = scalar_lea.sflag [#allocation9], 1
    %1684 = vsyncpa %s1683, 1

</llo_original>
